<compile_context>
chip_gen: v6e
topology: v6e:2x2x1
jax: 0.10.0
libtpu: 0.0.40
codegen_flags: <defaults>
</compile_context>

<pallas_src>
import functools

import jax
import jax.numpy as jnp
from jax import lax
from jax.experimental import pallas as pl
from jax.experimental.pallas import tpu as pltpu


# ----------------------------------------------------------------------------- helpers


def _round_up(n, m):
    return ((n + m - 1) // m) * m


def _cdiv(a, b):
    return (a + b - 1) // b


def _default_batch_tile():
    # v5e: 128x128 MXU and tighter vreg budget -> 128; v6e/v7x: 256-wide MXU -> 256.
    try:
        kind = jax.devices()[0].device_kind.lower()
        if "v5 lite" in kind or "v5e" in kind or "v5litepod" in kind:
            return 128
    except Exception:
        pass
    return 256


# ----------------------------------------------------------------------------- kernel


def _encoder_seq_kernel(Hp, Tblk, T_total,
                        gi_ref, h0_ref,
                        whh_ref, bhhn_ref,
                        wfc_ref, bfc_ref, wemb_ref, bemb_ref,
                        emb_ref, hfin_ref,
                        h_scr):
    """Tblk GRU steps + relu(fc1) + embedding for one (TB, *) batch tile."""
    t_blk = pl.program_id(1)

    # Initialise the carried hidden state at the first time block of this batch tile.
    @pl.when(t_blk == 0)
    def _():
        h_scr[...] = h0_ref[...]

    # Weights are VMEM-resident; load once per grid step (outside the inner loop).
    whh = whh_ref[...]          # (Hp, 3*Hp) bf16
    bhh_n = bhhn_ref[...]       # (1, Hp)    f32
    wfc = wfc_ref[...]          # (Hp, Hp)   bf16
    bfc = bfc_ref[...]          # (1, Hp)    f32
    wemb = wemb_ref[...]        # (Hp, Op)   bf16
    bemb = bemb_ref[...]        # (1, Op)    f32

    def step(i, h):
        t_global = t_blk * Tblk + i
        # Hoisted input projection (includes b_ih and the r/z part of b_hh).
        gi = gi_ref[i].astype(jnp.float32)                       # (TB, 3*Hp)
        # Recurrent projection: bf16 operands, f32 accumulation on the MXU.
        gh = jnp.dot(h.astype(jnp.bfloat16), whh,
                     preferred_element_type=jnp.float32)          # (TB, 3*Hp)

        rz = jax.nn.sigmoid(gi[:, :2 * Hp] + gh[:, :2 * Hp])      # one wide sigmoid
        r = rz[:, :Hp]
        z = rz[:, Hp:]
        n = jnp.tanh(gi[:, 2 * Hp:] + r * (gh[:, 2 * Hp:] + bhh_n))
        h_new = (1.0 - z) * n + z * h
        # Mask padded timesteps (T padded up to a multiple of Tblk).
        h_new = jnp.where(t_global < T_total, h_new, h)

        hfc = jnp.maximum(
            jnp.dot(h_new.astype(jnp.bfloat16), wfc,
                    preferred_element_type=jnp.float32) + bfc, 0.0)
        emb = jnp.dot(hfc.astype(jnp.bfloat16), wemb,
                      preferred_element_type=jnp.float32) + bemb

        emb_ref[i] = emb.astype(emb_ref.dtype)
        return h_new

    h = lax.fori_loop(0, Tblk, step, h_scr[...], unroll=True)
    h_scr[...] = h
    # Resident output block (same index across time) -> only the final value hits HBM.
    hfin_ref[...] = h


# ----------------------------------------------------------------------------- wrapper


def encoder_run_sequence(x_seq, h0, packed, dims, *, batch_tile=None, time_block=16):
    """Run the recurrent encoder over a whole sequence in a single pallas_call.

    x_seq: [T, B, input_dim] f32, h0: [B, hidden_dim] f32.
    Returns (embeddings [T, B, output_dim] f32, final hidden [B, hidden_dim] f32).
    """
    T, B, _ = x_seq.shape
    Hp, Op = dims["Hp"], dims["Op"]
    H, out_dim = dims["hidden_dim"], dims["output_dim"]

    if batch_tile is None:
        batch_tile = _default_batch_tile()

    # Balanced batch tiles (padding < one sublane group); >= 2 tiles for megacore
    # sharding of the "parallel" axis when the batch is large enough.
    n_bt = _cdiv(B, batch_tile)
    if B >= 256:
        n_bt = max(n_bt, 2)
    TB = _round_up(_cdiv(B, n_bt), 8)
    Bp = TB * n_bt

    # Time blocking.
    Tblk = max(1, min(time_block, T))
    nT = _cdiv(T, Tblk)
    Tp = nT * Tblk

    # ---- hoisted non-recurrent input projection: one big GEMM in XLA ------------
    # gi = x @ W_ih + (b_ih  [+ b_hh for the r/z gates]); unpadded K, bf16 operands.
    gi = jnp.dot(x_seq.astype(jnp.bfloat16), packed["wih"],
                 preferred_element_type=jnp.float32) + packed["bih_fold"]
    gi_p = jnp.zeros((Tp, Bp, 3 * Hp), jnp.bfloat16).at[:T, :B, :].set(
        gi.astype(jnp.bfloat16))
    h0p = jnp.zeros((Bp, Hp), jnp.float32).at[:B, :H].set(h0.astype(jnp.float32))

    kernel = functools.partial(_encoder_seq_kernel, Hp, Tblk, T)

    flops = 2 * Tp * Bp * (Hp * 3 * Hp + Hp * Hp + Hp * Op)
    transcendentals = 3 * Tp * Bp * Hp
    bytes_accessed = (2 * int(gi_p.size)
                      + 4 * (int(h0p.size) + Tp * Bp * Op + Bp * Hp)
                      + 2 * (int(packed["whh"].size) + int(packed["wfc"].size)
                             + int(packed["wemb"].size))
                      + 4 * (int(packed["bhh_n"].size) + int(packed["bfc"].size)
                             + int(packed["bemb"].size)))

    emb_p, h_fin = pl.pallas_call(
        kernel,
        out_shape=(jax.ShapeDtypeStruct((Tp, Bp, Op), jnp.float32),
                   jax.ShapeDtypeStruct((Bp, Hp), jnp.float32)),
        grid_spec=pltpu.PrefetchScalarGridSpec(
            num_scalar_prefetch=0,
            grid=(Bp // TB, nT),                                   # (batch tiles, time blocks)
            in_specs=[
                pl.BlockSpec((Tblk, TB, 3 * Hp), lambda b, t: (t, b, 0)),  # gi (streamed, bf16)
                pl.BlockSpec((TB, Hp), lambda b, t: (b, 0)),               # initial hidden
                pl.BlockSpec((Hp, 3 * Hp), lambda b, t: (0, 0)),           # W_hh  (resident)
                pl.BlockSpec((1, Hp), lambda b, t: (0, 0)),                # b_hh (n gate)
                pl.BlockSpec((Hp, Hp), lambda b, t: (0, 0)),               # W_fc1
                pl.BlockSpec((1, Hp), lambda b, t: (0, 0)),                # b_fc1
                pl.BlockSpec((Hp, Op), lambda b, t: (0, 0)),               # W_emb
                pl.BlockSpec((1, Op), lambda b, t: (0, 0)),                # b_emb
            ],
            out_specs=(
                pl.BlockSpec((Tblk, TB, Op), lambda b, t: (t, b, 0)),      # embeddings
                pl.BlockSpec((TB, Hp), lambda b, t: (b, 0)),               # final hidden
            ),
            scratch_shapes=[pltpu.VMEM((TB, Hp), jnp.float32)],            # carried hidden (f32)
        ),
        compiler_params=pltpu.CompilerParams(
            dimension_semantics=("parallel", "arbitrary")),
        cost_estimate=pl.CostEstimate(flops=flops,
                                      transcendentals=transcendentals,
                                      bytes_accessed=bytes_accessed),
    )(gi_p, h0p,
      packed["whh"], packed["bhh_n"],
      packed["wfc"], packed["bfc"],
      packed["wemb"], packed["bemb"])

    return emb_p[:T, :B, :out_dim], h_fin[:B, :H]


def encoder_forward(x, hidden, packed, dims, **kw):
    """Single-step Encoder.forward(x, hidden) -> (embedding, h_out)."""
    emb_seq, h_fin = encoder_run_sequence(x[None], hidden, packed, dims, **kw)
    return emb_seq[0], h_fin         # with T == 1 the final hidden IS h_out


def encoder_forward_all(x, packed, dims, **kw):
    """Encoder.forward_all(x): x is (bs, max_t, n_agents, input_dim)."""
    bs, max_t, n_agents, input_dim = x.shape
    H, out_dim = dims["hidden_dim"], dims["output_dim"]
    x_seq = jnp.transpose(x, (1, 0, 2, 3)).reshape(max_t, bs * n_agents, input_dim)
    h0 = jnp.zeros((bs * n_agents, H), jnp.float32)       # init_hidden(): zeros
    emb_seq, _ = encoder_run_sequence(x_seq, h0, packed, dims, **kw)
    emb = emb_seq.reshape(max_t, bs, n_agents, out_dim)
    return jnp.transpose(emb, (1, 0, 2, 3))                # (bs, max_t, n_agents, out)


# ---------------------------------------------------------------- params (PyTorch layout)


def init_encoder_params(key, input_dim, hidden_dim, output_dim):
    """Deterministic init in PyTorch layout (W_ih [3H,in], W_hh [3H,H], Linear [out,in])."""
    # TODO(synk): orthogonal init (args.use_orthogonal_init) not replicated; init-only,
    # does not change forward semantics.
    ks = jax.random.split(key, 8)
    bg = 1.0 / float(hidden_dim) ** 0.5

    def u(k, shape, bound):
        return jax.random.uniform(k, shape, jnp.float32, -bound, bound)

    return dict(
        w_ih=u(ks[0], (3 * hidden_dim, input_dim), bg),
        w_hh=u(ks[1], (3 * hidden_dim, hidden_dim), bg),
        b_ih=u(ks[2], (3 * hidden_dim,), bg),
        b_hh=u(ks[3], (3 * hidden_dim,), bg),
        w_fc1=u(ks[4], (hidden_dim, hidden_dim), bg),
        b_fc1=u(ks[5], (hidden_dim,), bg),
        w_emb=u(ks[6], (output_dim, hidden_dim), bg),
        b_emb=u(ks[7], (output_dim,), bg),
    )


def pack_params(p, input_dim, hidden_dim, output_dim):
    """Transpose to [in,out], split GRU gates, lane-pad to 128, cast weights to bf16.

    Gate order matches torch.nn.GRUCell (r, z, n).  b_ih plus the r/z part of b_hh
    are folded into `bih_fold` (used by the hoisted input projection); only the n-gate
    hh bias is kept separate (it is applied inside the r-multiply).
    """
    H = hidden_dim
    Hp = _round_up(hidden_dim, 128)
    Op = _round_up(output_dim, 128)

    def pad2(a, rows, cols):
        return jnp.zeros((rows, cols), jnp.float32).at[:a.shape[0], :a.shape[1]].set(a)

    def gate_pack_w(w, k_rows, k_pad):      # w: (3H, k_rows) -> (k_pad, 3*Hp)
        out = jnp.zeros((k_pad, 3 * Hp), jnp.float32)
        for g in range(3):
            wg = w[g * H:(g + 1) * H, :].T                       # (k_rows, H)
            out = out.at[:k_rows, g * Hp:g * Hp + H].set(wg)
        return out

    bih_fold = jnp.zeros((3 * Hp,), jnp.float32)
    for g in range(3):
        bg = p["b_ih"][g * H:(g + 1) * H]
        if g < 2:                                                # fold b_hh for r, z
            bg = bg + p["b_hh"][g * H:(g + 1) * H]
        bih_fold = bih_fold.at[g * Hp:g * Hp + H].set(bg)

    packed = dict(
        wih=gate_pack_w(p["w_ih"], input_dim, input_dim).astype(jnp.bfloat16),
        bih_fold=bih_fold,                                                    # f32
        whh=gate_pack_w(p["w_hh"], H, Hp).astype(jnp.bfloat16),
        bhh_n=jnp.zeros((1, Hp), jnp.float32).at[0, :H].set(p["b_hh"][2 * H:]),
        wfc=pad2(p["w_fc1"].T, Hp, Hp).astype(jnp.bfloat16),
        bfc=jnp.zeros((1, Hp), jnp.float32).at[0, :H].set(p["b_fc1"]),
        wemb=pad2(p["w_emb"].T, Hp, Op).astype(jnp.bfloat16),
        bemb=jnp.zeros((1, Op), jnp.float32).at[0, :output_dim].set(p["b_emb"]),
    )
    dims = dict(input_dim=input_dim, hidden_dim=hidden_dim, output_dim=output_dim,
                Hp=Hp, Op=Op)
    return packed, dims


# --------------------------------------------------------------------- pure-JAX reference


def _gru_cell_ref(x, h, p, H):
    gi = x @ p["w_ih"].T + p["b_ih"]
    gh = h @ p["w_hh"].T + p["b_hh"]
    r = jax.nn.sigmoid(gi[:, :H] + gh[:, :H])
    z = jax.nn.sigmoid(gi[:, H:2 * H] + gh[:, H:2 * H])
    n = jnp.tanh(gi[:, 2 * H:] + r * gh[:, 2 * H:])
    return (1.0 - z) * n + z * h


def encoder_reference_forward(x, hidden, p):
    H = p["w_hh"].shape[1]
    h_out = _gru_cell_ref(x, hidden, p, H)
    h = jnp.maximum(h_out @ p["w_fc1"].T + p["b_fc1"], 0.0)
    emb = h @ p["w_emb"].T + p["b_emb"]
    return emb, h_out


def encoder_reference_forward_all(x, p):
    bs, max_t, n_agents, input_dim = x.shape
    H = p["w_hh"].shape[1]
    h = jnp.zeros((bs * n_agents, H), jnp.float32)
    embs = []
    for t in range(max_t):
        x_t = x[:, t].reshape(-1, input_dim)
        emb, h = encoder_reference_forward(x_t, h, p)
        embs.append(emb.reshape(bs, n_agents, -1))
    return jnp.stack(embs, axis=1)


# ------------------------------------------------------------------------------- demo


if __name__ == "__main__":
    BS, MAX_T, N_AGENTS = 2, 8, 4
    INPUT_DIM, HIDDEN_DIM, OUTPUT_DIM = 16, 32, 16

    key = jax.random.PRNGKey(0)
    kx, kp = jax.random.split(key)
    x = jax.random.normal(kx, (BS, MAX_T, N_AGENTS, INPUT_DIM), dtype=jnp.float32)
    params = init_encoder_params(kp, INPUT_DIM, HIDDEN_DIM, OUTPUT_DIM)
    packed, dims = pack_params(params, INPUT_DIM, HIDDEN_DIM, OUTPUT_DIM)

    # Tolerances are loosened vs. the pure-f32 reference because matmul operands run
    # in bf16 on the MXU (f32 accumulation, f32 hidden carry).
    TOL = dict(atol=5e-2, rtol=5e-2)

    # forward_all: full recurrent sequence in one fused Pallas kernel.
    embeddings = encoder_forward_all(x, packed, dims)
    jax.block_until_ready(embeddings)
    assert embeddings.shape == (BS, MAX_T, N_AGENTS, OUTPUT_DIM)
    ref_all = encoder_reference_forward_all(x, params)
    assert jnp.allclose(embeddings, ref_all, **TOL)

    # single-step forward(x, hidden).
    x0 = x[:, 0].reshape(-1, INPUT_DIM)
    h0 = jnp.zeros((BS * N_AGENTS, HIDDEN_DIM), jnp.float32)
    emb_step, h_step = encoder_forward(x0, h0, packed, dims)
    jax.block_until_ready((emb_step, h_step))
    ref_emb, ref_h = encoder_reference_forward(x0, h0, params)
    assert emb_step.shape == (BS * N_AGENTS, OUTPUT_DIM)
    assert h_step.shape == (BS * N_AGENTS, HIDDEN_DIM)
    assert jnp.allclose(emb_step, ref_emb, **TOL)
    assert jnp.allclose(h_step, ref_h, **TOL)

    print("KERNEL_OK")
</pallas_src>

<mosaic_0001>
module attributes {stable_mosaic.version = 11 : i64} {
  func.func @_encoder_seq_kernel(%arg0: i32, %arg1: i32, %arg2: memref<8x8x384xbf16, #tpu.memory_space<vmem>>, %arg3: memref<8x128xf32, #tpu.memory_space<vmem>>, %arg4: memref<128x384xbf16, #tpu.memory_space<vmem>>, %arg5: memref<1x128xf32, #tpu.memory_space<vmem>>, %arg6: memref<128x128xbf16, #tpu.memory_space<vmem>>, %arg7: memref<1x128xf32, #tpu.memory_space<vmem>>, %arg8: memref<128x128xbf16, #tpu.memory_space<vmem>>, %arg9: memref<1x128xf32, #tpu.memory_space<vmem>>, %arg10: memref<8x8x128xf32, #tpu.memory_space<vmem>>, %arg11: memref<8x128xf32, #tpu.memory_space<vmem>>, %arg12: memref<8x128xf32, #tpu.memory_space<vmem>>) attributes {dimension_semantics = [#tpu.dimension_semantics<parallel>, #tpu.dimension_semantics<arbitrary>], iteration_bounds = array<i64: 1, 1>, scalar_prefetch = 0 : i64, scratch_operands = 1 : i64, tpu.core_type = #tpu.core_type<tc>, window_params = [{transform_indices = @transform_0, window_bounds = array<i64: 8, 8, 384>}, {transform_indices = @transform_1, window_bounds = array<i64: 8, 128>}, {pipeline_mode = #tpu.pipeline_mode<synchronous>, transform_indices = @transform_2, window_bounds = array<i64: 128, 384>}, {pipeline_mode = #tpu.pipeline_mode<synchronous>, transform_indices = @transform_3, window_bounds = array<i64: 1, 128>}, {pipeline_mode = #tpu.pipeline_mode<synchronous>, transform_indices = @transform_4, window_bounds = array<i64: 128, 128>}, {pipeline_mode = #tpu.pipeline_mode<synchronous>, transform_indices = @transform_5, window_bounds = array<i64: 1, 128>}, {pipeline_mode = #tpu.pipeline_mode<synchronous>, transform_indices = @transform_6, window_bounds = array<i64: 128, 128>}, {pipeline_mode = #tpu.pipeline_mode<synchronous>, transform_indices = @transform_7, window_bounds = array<i64: 1, 128>}, {transform_indices = @transform_8, window_bounds = array<i64: 8, 8, 128>}, {transform_indices = @transform_9, window_bounds = array<i64: 8, 128>}]} {
    %c0_i32 = arith.constant 0 : i32
    %0 = arith.cmpi eq, %arg1, %c0_i32 : i32
    %1 = arith.extui %0 : i1 to i32
    %c0_i32_0 = arith.constant 0 : i32
    %2 = arith.cmpi ne, %1, %c0_i32_0 : i32
    scf.if %2 {
      %c0_114 = arith.constant 0 : index
      %c0_115 = arith.constant 0 : index
      %380 = vector.load %arg3[%c0_114, %c0_115] : memref<8x128xf32, #tpu.memory_space<vmem>>, vector<8x128xf32>
      %c0_116 = arith.constant 0 : index
      %c0_117 = arith.constant 0 : index
      %381 = vector.load %arg12[%c0_116, %c0_117] : memref<8x128xf32, #tpu.memory_space<vmem>>, vector<8x128xf32>
      tpu.vector_store %arg12[%c0_116, %c0_117], %380 {strides = array<i32>} : memref<8x128xf32, #tpu.memory_space<vmem>>, vector<8x128xf32>,
    } else {
    }
    %c0 = arith.constant 0 : index
    %c0_1 = arith.constant 0 : index
    %3 = vector.load %arg4[%c0, %c0_1] : memref<128x384xbf16, #tpu.memory_space<vmem>>, vector<128x384xbf16>
    %c0_2 = arith.constant 0 : index
    %c0_3 = arith.constant 0 : index
    %4 = vector.load %arg5[%c0_2, %c0_3] : memref<1x128xf32, #tpu.memory_space<vmem>>, vector<1x128xf32>
    %c0_4 = arith.constant 0 : index
    %c0_5 = arith.constant 0 : index
    %5 = vector.load %arg6[%c0_4, %c0_5] : memref<128x128xbf16, #tpu.memory_space<vmem>>, vector<128x128xbf16>
    %c0_6 = arith.constant 0 : index
    %c0_7 = arith.constant 0 : index
    %6 = vector.load %arg7[%c0_6, %c0_7] : memref<1x128xf32, #tpu.memory_space<vmem>>, vector<1x128xf32>
    %c0_8 = arith.constant 0 : index
    %c0_9 = arith.constant 0 : index
    %7 = vector.load %arg8[%c0_8, %c0_9] : memref<128x128xbf16, #tpu.memory_space<vmem>>, vector<128x128xbf16>
    %c0_10 = arith.constant 0 : index
    %c0_11 = arith.constant 0 : index
    %8 = vector.load %arg9[%c0_10, %c0_11] : memref<1x128xf32, #tpu.memory_space<vmem>>, vector<1x128xf32>
    %c0_12 = arith.constant 0 : index
    %c0_13 = arith.constant 0 : index
    %9 = vector.load %arg12[%c0_12, %c0_13] : memref<8x128xf32, #tpu.memory_space<vmem>>, vector<8x128xf32>
    %c0_i32_14 = arith.constant 0 : i32
    %c8_i32 = arith.constant 8 : i32
    %10 = arith.muli %arg1, %c8_i32 : i32
    %11 = arith.addi %10, %c0_i32_14 : i32
    %12 = arith.index_cast %c0_i32_14 : i32 to index
    %c0_15 = arith.constant 0 : index
    %c0_16 = arith.constant 0 : index
    %13 = vector.load %arg2[%12, %c0_15, %c0_16] : memref<8x8x384xbf16, #tpu.memory_space<vmem>>, vector<1x8x384xbf16>
    %14 = vector.shape_cast %13 : vector<1x8x384xbf16> to vector<8x384xbf16>
    %15 = arith.extf %14 : vector<8x384xbf16> to vector<8x384xf32>
    %16 = arith.truncf %9 : vector<8x128xf32> to vector<8x128xbf16>
    %cst = arith.constant dense<0.000000e+00> : vector<8x384xf32>
    %17 = tpu.matmul %16, %3, %cst {dimension_numbers = #tpu.dot_dimension_numbers<[1], [0], [0], [1], [0, 0, 1, 1], [], []>} : vector<8x128xbf16>, vector<128x384xbf16>, vector<8x384xf32> -> vector<8x384xf32>
    %18 = vector.extract_strided_slice %15 {offsets = [0, 0], sizes = [8, 256], strides = [1, 1]} : vector<8x384xf32> to vector<8x256xf32>
    %19 = vector.extract_strided_slice %17 {offsets = [0, 0], sizes = [8, 256], strides = [1, 1]} : vector<8x384xf32> to vector<8x256xf32>
    %20 = arith.addf %18, %19 : vector<8x256xf32>
    %21 = arith.negf %20 : vector<8x256xf32>
    %22 = math.exp %21 : vector<8x256xf32>
    %cst_17 = arith.constant 1.000000e+00 : f32
    %23 = vector.broadcast %cst_17 : f32 to vector<8x256xf32>
    %24 = arith.addf %23, %22 : vector<8x256xf32>
    %25 = arith.divf %23, %24 : vector<8x256xf32>
    %26 = vector.extract_strided_slice %25 {offsets = [0, 0], sizes = [8, 128], strides = [1, 1]} : vector<8x256xf32> to vector<8x128xf32>
    %27 = vector.extract_strided_slice %25 {offsets = [0, 128], sizes = [8, 128], strides = [1, 1]} : vector<8x256xf32> to vector<8x128xf32>
    %28 = vector.extract_strided_slice %15 {offsets = [0, 256], sizes = [8, 128], strides = [1, 1]} : vector<8x384xf32> to vector<8x128xf32>
    %29 = vector.extract_strided_slice %17 {offsets = [0, 256], sizes = [8, 128], strides = [1, 1]} : vector<8x384xf32> to vector<8x128xf32>
    %30 = vector.broadcast %4 : vector<1x128xf32> to vector<8x128xf32>
    %31 = arith.addf %29, %30 : vector<8x128xf32>
    %32 = arith.mulf %26, %31 : vector<8x128xf32>
    %33 = arith.addf %28, %32 : vector<8x128xf32>
    %34 = math.tanh %33 : vector<8x128xf32>
    %cst_18 = arith.constant 1.000000e+00 : f32
    %35 = vector.broadcast %cst_18 : f32 to vector<8x128xf32>
    %36 = arith.subf %35, %27 : vector<8x128xf32>
    %37 = arith.mulf %36, %34 : vector<8x128xf32>
    %38 = arith.mulf %27, %9 : vector<8x128xf32>
    %39 = arith.addf %37, %38 : vector<8x128xf32>
    %c8_i32_19 = arith.constant 8 : i32
    %40 = arith.cmpi slt, %11, %c8_i32_19 : i32
    %41 = arith.select %40, %39, %9 : vector<8x128xf32>
    %42 = arith.truncf %41 : vector<8x128xf32> to vector<8x128xbf16>
    %cst_20 = arith.constant dense<0.000000e+00> : vector<8x128xf32>
    %43 = tpu.matmul %42, %5, %cst_20 {dimension_numbers = #tpu.dot_dimension_numbers<[1], [0], [0], [1], [0, 0, 1, 1], [], []>} : vector<8x128xbf16>, vector<128x128xbf16>, vector<8x128xf32> -> vector<8x128xf32>
    %44 = vector.broadcast %6 : vector<1x128xf32> to vector<8x128xf32>
    %45 = arith.addf %43, %44 : vector<8x128xf32>
    %cst_21 = arith.constant 0.000000e+00 : f32
    %46 = vector.broadcast %cst_21 : f32 to vector<8x128xf32>
    %47 = arith.maximumf %45, %46 : vector<8x128xf32>
    %48 = arith.truncf %47 : vector<8x128xf32> to vector<8x128xbf16>
    %cst_22 = arith.constant dense<0.000000e+00> : vector<8x128xf32>
    %49 = tpu.matmul %48, %7, %cst_22 {dimension_numbers = #tpu.dot_dimension_numbers<[1], [0], [0], [1], [0, 0, 1, 1], [], []>} : vector<8x128xbf16>, vector<128x128xbf16>, vector<8x128xf32> -> vector<8x128xf32>
    %50 = vector.broadcast %8 : vector<1x128xf32> to vector<8x128xf32>
    %51 = arith.addf %49, %50 : vector<8x128xf32>
    %52 = arith.index_cast %c0_i32_14 : i32 to index
    %c0_23 = arith.constant 0 : index
    %c0_24 = arith.constant 0 : index
    %53 = vector.load %arg10[%52, %c0_23, %c0_24] : memref<8x8x128xf32, #tpu.memory_space<vmem>>, vector<1x8x128xf32>
    %54 = vector.shape_cast %53 : vector<1x8x128xf32> to vector<8x128xf32>
    %55 = vector.shape_cast %51 : vector<8x128xf32> to vector<1x8x128xf32>
    tpu.vector_store %arg10[%52, %c0_23, %c0_24], %55 {strides = array<i32>} : memref<8x8x128xf32, #tpu.memory_space<vmem>>, vector<1x8x128xf32>,
    %c1_i32 = arith.constant 1 : i32
    %c8_i32_25 = arith.constant 8 : i32
    %56 = arith.muli %arg1, %c8_i32_25 : i32
    %57 = arith.addi %56, %c1_i32 : i32
    %58 = arith.index_cast %c1_i32 : i32 to index
    %c0_26 = arith.constant 0 : index
    %c0_27 = arith.constant 0 : index
    %59 = vector.load %arg2[%58, %c0_26, %c0_27] : memref<8x8x384xbf16, #tpu.memory_space<vmem>>, vector<1x8x384xbf16>
    %60 = vector.shape_cast %59 : vector<1x8x384xbf16> to vector<8x384xbf16>
    %61 = arith.extf %60 : vector<8x384xbf16> to vector<8x384xf32>
    %62 = arith.truncf %41 : vector<8x128xf32> to vector<8x128xbf16>
    %cst_28 = arith.constant dense<0.000000e+00> : vector<8x384xf32>
    %63 = tpu.matmul %62, %3, %cst_28 {dimension_numbers = #tpu.dot_dimension_numbers<[1], [0], [0], [1], [0, 0, 1, 1], [], []>} : vector<8x128xbf16>, vector<128x384xbf16>, vector<8x384xf32> -> vector<8x384xf32>
    %64 = vector.extract_strided_slice %61 {offsets = [0, 0], sizes = [8, 256], strides = [1, 1]} : vector<8x384xf32> to vector<8x256xf32>
    %65 = vector.extract_strided_slice %63 {offsets = [0, 0], sizes = [8, 256], strides = [1, 1]} : vector<8x384xf32> to vector<8x256xf32>
    %66 = arith.addf %64, %65 : vector<8x256xf32>
    %67 = arith.negf %66 : vector<8x256xf32>
    %68 = math.exp %67 : vector<8x256xf32>
    %cst_29 = arith.constant 1.000000e+00 : f32
    %69 = vector.broadcast %cst_29 : f32 to vector<8x256xf32>
    %70 = arith.addf %69, %68 : vector<8x256xf32>
    %71 = arith.divf %69, %70 : vector<8x256xf32>
    %72 = vector.extract_strided_slice %71 {offsets = [0, 0], sizes = [8, 128], strides = [1, 1]} : vector<8x256xf32> to vector<8x128xf32>
    %73 = vector.extract_strided_slice %71 {offsets = [0, 128], sizes = [8, 128], strides = [1, 1]} : vector<8x256xf32> to vector<8x128xf32>
    %74 = vector.extract_strided_slice %61 {offsets = [0, 256], sizes = [8, 128], strides = [1, 1]} : vector<8x384xf32> to vector<8x128xf32>
    %75 = vector.extract_strided_slice %63 {offsets = [0, 256], sizes = [8, 128], strides = [1, 1]} : vector<8x384xf32> to vector<8x128xf32>
    %76 = vector.broadcast %4 : vector<1x128xf32> to vector<8x128xf32>
    %77 = arith.addf %75, %76 : vector<8x128xf32>
    %78 = arith.mulf %72, %77 : vector<8x128xf32>
    %79 = arith.addf %74, %78 : vector<8x128xf32>
    %80 = math.tanh %79 : vector<8x128xf32>
    %cst_30 = arith.constant 1.000000e+00 : f32
    %81 = vector.broadcast %cst_30 : f32 to vector<8x128xf32>
    %82 = arith.subf %81, %73 : vector<8x128xf32>
    %83 = arith.mulf %82, %80 : vector<8x128xf32>
    %84 = arith.mulf %73, %41 : vector<8x128xf32>
    %85 = arith.addf %83, %84 : vector<8x128xf32>
    %c8_i32_31 = arith.constant 8 : i32
    %86 = arith.cmpi slt, %57, %c8_i32_31 : i32
    %87 = arith.select %86, %85, %41 : vector<8x128xf32>
    %88 = arith.truncf %87 : vector<8x128xf32> to vector<8x128xbf16>
    %cst_32 = arith.constant dense<0.000000e+00> : vector<8x128xf32>
    %89 = tpu.matmul %88, %5, %cst_32 {dimension_numbers = #tpu.dot_dimension_numbers<[1], [0], [0], [1], [0, 0, 1, 1], [], []>} : vector<8x128xbf16>, vector<128x128xbf16>, vector<8x128xf32> -> vector<8x128xf32>
    %90 = vector.broadcast %6 : vector<1x128xf32> to vector<8x128xf32>
    %91 = arith.addf %89, %90 : vector<8x128xf32>
    %cst_33 = arith.constant 0.000000e+00 : f32
    %92 = vector.broadcast %cst_33 : f32 to vector<8x128xf32>
    %93 = arith.maximumf %91, %92 : vector<8x128xf32>
    %94 = arith.truncf %93 : vector<8x128xf32> to vector<8x128xbf16>
    %cst_34 = arith.constant dense<0.000000e+00> : vector<8x128xf32>
    %95 = tpu.matmul %94, %7, %cst_34 {dimension_numbers = #tpu.dot_dimension_numbers<[1], [0], [0], [1], [0, 0, 1, 1], [], []>} : vector<8x128xbf16>, vector<128x128xbf16>, vector<8x128xf32> -> vector<8x128xf32>
    %96 = vector.broadcast %8 : vector<1x128xf32> to vector<8x128xf32>
    %97 = arith.addf %95, %96 : vector<8x128xf32>
    %98 = arith.index_cast %c1_i32 : i32 to index
    %c0_35 = arith.constant 0 : index
    %c0_36 = arith.constant 0 : index
    %99 = vector.load %arg10[%98, %c0_35, %c0_36] : memref<8x8x128xf32, #tpu.memory_space<vmem>>, vector<1x8x128xf32>
    %100 = vector.shape_cast %99 : vector<1x8x128xf32> to vector<8x128xf32>
    %101 = vector.shape_cast %97 : vector<8x128xf32> to vector<1x8x128xf32>
    tpu.vector_store %arg10[%98, %c0_35, %c0_36], %101 {strides = array<i32>} : memref<8x8x128xf32, #tpu.memory_space<vmem>>, vector<1x8x128xf32>,
    %c2_i32 = arith.constant 2 : i32
    %c8_i32_37 = arith.constant 8 : i32
    %102 = arith.muli %arg1, %c8_i32_37 : i32
    %103 = arith.addi %102, %c2_i32 : i32
    %104 = arith.index_cast %c2_i32 : i32 to index
    %c0_38 = arith.constant 0 : index
    %c0_39 = arith.constant 0 : index
    %105 = vector.load %arg2[%104, %c0_38, %c0_39] : memref<8x8x384xbf16, #tpu.memory_space<vmem>>, vector<1x8x384xbf16>
    %106 = vector.shape_cast %105 : vector<1x8x384xbf16> to vector<8x384xbf16>
    %107 = arith.extf %106 : vector<8x384xbf16> to vector<8x384xf32>
    %108 = arith.truncf %87 : vector<8x128xf32> to vector<8x128xbf16>
    %cst_40 = arith.constant dense<0.000000e+00> : vector<8x384xf32>
    %109 = tpu.matmul %108, %3, %cst_40 {dimension_numbers = #tpu.dot_dimension_numbers<[1], [0], [0], [1], [0, 0, 1, 1], [], []>} : vector<8x128xbf16>, vector<128x384xbf16>, vector<8x384xf32> -> vector<8x384xf32>
    %110 = vector.extract_strided_slice %107 {offsets = [0, 0], sizes = [8, 256], strides = [1, 1]} : vector<8x384xf32> to vector<8x256xf32>
    %111 = vector.extract_strided_slice %109 {offsets = [0, 0], sizes = [8, 256], strides = [1, 1]} : vector<8x384xf32> to vector<8x256xf32>
    %112 = arith.addf %110, %111 : vector<8x256xf32>
    %113 = arith.negf %112 : vector<8x256xf32>
    %114 = math.exp %113 : vector<8x256xf32>
    %cst_41 = arith.constant 1.000000e+00 : f32
    %115 = vector.broadcast %cst_41 : f32 to vector<8x256xf32>
    %116 = arith.addf %115, %114 : vector<8x256xf32>
    %117 = arith.divf %115, %116 : vector<8x256xf32>
    %118 = vector.extract_strided_slice %117 {offsets = [0, 0], sizes = [8, 128], strides = [1, 1]} : vector<8x256xf32> to vector<8x128xf32>
    %119 = vector.extract_strided_slice %117 {offsets = [0, 128], sizes = [8, 128], strides = [1, 1]} : vector<8x256xf32> to vector<8x128xf32>
    %120 = vector.extract_strided_slice %107 {offsets = [0, 256], sizes = [8, 128], strides = [1, 1]} : vector<8x384xf32> to vector<8x128xf32>
    %121 = vector.extract_strided_slice %109 {offsets = [0, 256], sizes = [8, 128], strides = [1, 1]} : vector<8x384xf32> to vector<8x128xf32>
    %122 = vector.broadcast %4 : vector<1x128xf32> to vector<8x128xf32>
    %123 = arith.addf %121, %122 : vector<8x128xf32>
    %124 = arith.mulf %118, %123 : vector<8x128xf32>
    %125 = arith.addf %120, %124 : vector<8x128xf32>
    %126 = math.tanh %125 : vector<8x128xf32>
    %cst_42 = arith.constant 1.000000e+00 : f32
    %127 = vector.broadcast %cst_42 : f32 to vector<8x128xf32>
    %128 = arith.subf %127, %119 : vector<8x128xf32>
    %129 = arith.mulf %128, %126 : vector<8x128xf32>
    %130 = arith.mulf %119, %87 : vector<8x128xf32>
    %131 = arith.addf %129, %130 : vector<8x128xf32>
    %c8_i32_43 = arith.constant 8 : i32
    %132 = arith.cmpi slt, %103, %c8_i32_43 : i32
    %133 = arith.select %132, %131, %87 : vector<8x128xf32>
    %134 = arith.truncf %133 : vector<8x128xf32> to vector<8x128xbf16>
    %cst_44 = arith.constant dense<0.000000e+00> : vector<8x128xf32>
    %135 = tpu.matmul %134, %5, %cst_44 {dimension_numbers = #tpu.dot_dimension_numbers<[1], [0], [0], [1], [0, 0, 1, 1], [], []>} : vector<8x128xbf16>, vector<128x128xbf16>, vector<8x128xf32> -> vector<8x128xf32>
    %136 = vector.broadcast %6 : vector<1x128xf32> to vector<8x128xf32>
    %137 = arith.addf %135, %136 : vector<8x128xf32>
    %cst_45 = arith.constant 0.000000e+00 : f32
    %138 = vector.broadcast %cst_45 : f32 to vector<8x128xf32>
    %139 = arith.maximumf %137, %138 : vector<8x128xf32>
    %140 = arith.truncf %139 : vector<8x128xf32> to vector<8x128xbf16>
    %cst_46 = arith.constant dense<0.000000e+00> : vector<8x128xf32>
    %141 = tpu.matmul %140, %7, %cst_46 {dimension_numbers = #tpu.dot_dimension_numbers<[1], [0], [0], [1], [0, 0, 1, 1], [], []>} : vector<8x128xbf16>, vector<128x128xbf16>, vector<8x128xf32> -> vector<8x128xf32>
    %142 = vector.broadcast %8 : vector<1x128xf32> to vector<8x128xf32>
    %143 = arith.addf %141, %142 : vector<8x128xf32>
    %144 = arith.index_cast %c2_i32 : i32 to index
    %c0_47 = arith.constant 0 : index
    %c0_48 = arith.constant 0 : index
    %145 = vector.load %arg10[%144, %c0_47, %c0_48] : memref<8x8x128xf32, #tpu.memory_space<vmem>>, vector<1x8x128xf32>
    %146 = vector.shape_cast %145 : vector<1x8x128xf32> to vector<8x128xf32>
    %147 = vector.shape_cast %143 : vector<8x128xf32> to vector<1x8x128xf32>
    tpu.vector_store %arg10[%144, %c0_47, %c0_48], %147 {strides = array<i32>} : memref<8x8x128xf32, #tpu.memory_space<vmem>>, vector<1x8x128xf32>,
    %c3_i32 = arith.constant 3 : i32
    %c8_i32_49 = arith.constant 8 : i32
    %148 = arith.muli %arg1, %c8_i32_49 : i32
    %149 = arith.addi %148, %c3_i32 : i32
    %150 = arith.index_cast %c3_i32 : i32 to index
    %c0_50 = arith.constant 0 : index
    %c0_51 = arith.constant 0 : index
    %151 = vector.load %arg2[%150, %c0_50, %c0_51] : memref<8x8x384xbf16, #tpu.memory_space<vmem>>, vector<1x8x384xbf16>
    %152 = vector.shape_cast %151 : vector<1x8x384xbf16> to vector<8x384xbf16>
    %153 = arith.extf %152 : vector<8x384xbf16> to vector<8x384xf32>
    %154 = arith.truncf %133 : vector<8x128xf32> to vector<8x128xbf16>
    %cst_52 = arith.constant dense<0.000000e+00> : vector<8x384xf32>
    %155 = tpu.matmul %154, %3, %cst_52 {dimension_numbers = #tpu.dot_dimension_numbers<[1], [0], [0], [1], [0, 0, 1, 1], [], []>} : vector<8x128xbf16>, vector<128x384xbf16>, vector<8x384xf32> -> vector<8x384xf32>
    %156 = vector.extract_strided_slice %153 {offsets = [0, 0], sizes = [8, 256], strides = [1, 1]} : vector<8x384xf32> to vector<8x256xf32>
    %157 = vector.extract_strided_slice %155 {offsets = [0, 0], sizes = [8, 256], strides = [1, 1]} : vector<8x384xf32> to vector<8x256xf32>
    %158 = arith.addf %156, %157 : vector<8x256xf32>
    %159 = arith.negf %158 : vector<8x256xf32>
    %160 = math.exp %159 : vector<8x256xf32>
    %cst_53 = arith.constant 1.000000e+00 : f32
    %161 = vector.broadcast %cst_53 : f32 to vector<8x256xf32>
    %162 = arith.addf %161, %160 : vector<8x256xf32>
    %163 = arith.divf %161, %162 : vector<8x256xf32>
    %164 = vector.extract_strided_slice %163 {offsets = [0, 0], sizes = [8, 128], strides = [1, 1]} : vector<8x256xf32> to vector<8x128xf32>
    %165 = vector.extract_strided_slice %163 {offsets = [0, 128], sizes = [8, 128], strides = [1, 1]} : vector<8x256xf32> to vector<8x128xf32>
    %166 = vector.extract_strided_slice %153 {offsets = [0, 256], sizes = [8, 128], strides = [1, 1]} : vector<8x384xf32> to vector<8x128xf32>
    %167 = vector.extract_strided_slice %155 {offsets = [0, 256], sizes = [8, 128], strides = [1, 1]} : vector<8x384xf32> to vector<8x128xf32>
    %168 = vector.broadcast %4 : vector<1x128xf32> to vector<8x128xf32>
    %169 = arith.addf %167, %168 : vector<8x128xf32>
    %170 = arith.mulf %164, %169 : vector<8x128xf32>
    %171 = arith.addf %166, %170 : vector<8x128xf32>
    %172 = math.tanh %171 : vector<8x128xf32>
    %cst_54 = arith.constant 1.000000e+00 : f32
    %173 = vector.broadcast %cst_54 : f32 to vector<8x128xf32>
    %174 = arith.subf %173, %165 : vector<8x128xf32>
    %175 = arith.mulf %174, %172 : vector<8x128xf32>
    %176 = arith.mulf %165, %133 : vector<8x128xf32>
    %177 = arith.addf %175, %176 : vector<8x128xf32>
    %c8_i32_55 = arith.constant 8 : i32
    %178 = arith.cmpi slt, %149, %c8_i32_55 : i32
    %179 = arith.select %178, %177, %133 : vector<8x128xf32>
    %180 = arith.truncf %179 : vector<8x128xf32> to vector<8x128xbf16>
    %cst_56 = arith.constant dense<0.000000e+00> : vector<8x128xf32>
    %181 = tpu.matmul %180, %5, %cst_56 {dimension_numbers = #tpu.dot_dimension_numbers<[1], [0], [0], [1], [0, 0, 1, 1], [], []>} : vector<8x128xbf16>, vector<128x128xbf16>, vector<8x128xf32> -> vector<8x128xf32>
    %182 = vector.broadcast %6 : vector<1x128xf32> to vector<8x128xf32>
    %183 = arith.addf %181, %182 : vector<8x128xf32>
    %cst_57 = arith.constant 0.000000e+00 : f32
    %184 = vector.broadcast %cst_57 : f32 to vector<8x128xf32>
    %185 = arith.maximumf %183, %184 : vector<8x128xf32>
    %186 = arith.truncf %185 : vector<8x128xf32> to vector<8x128xbf16>
    %cst_58 = arith.constant dense<0.000000e+00> : vector<8x128xf32>
    %187 = tpu.matmul %186, %7, %cst_58 {dimension_numbers = #tpu.dot_dimension_numbers<[1], [0], [0], [1], [0, 0, 1, 1], [], []>} : vector<8x128xbf16>, vector<128x128xbf16>, vector<8x128xf32> -> vector<8x128xf32>
    %188 = vector.broadcast %8 : vector<1x128xf32> to vector<8x128xf32>
    %189 = arith.addf %187, %188 : vector<8x128xf32>
    %190 = arith.index_cast %c3_i32 : i32 to index
    %c0_59 = arith.constant 0 : index
    %c0_60 = arith.constant 0 : index
    %191 = vector.load %arg10[%190, %c0_59, %c0_60] : memref<8x8x128xf32, #tpu.memory_space<vmem>>, vector<1x8x128xf32>
    %192 = vector.shape_cast %191 : vector<1x8x128xf32> to vector<8x128xf32>
    %193 = vector.shape_cast %189 : vector<8x128xf32> to vector<1x8x128xf32>
    tpu.vector_store %arg10[%190, %c0_59, %c0_60], %193 {strides = array<i32>} : memref<8x8x128xf32, #tpu.memory_space<vmem>>, vector<1x8x128xf32>,
    %c4_i32 = arith.constant 4 : i32
    %c8_i32_61 = arith.constant 8 : i32
    %194 = arith.muli %arg1, %c8_i32_61 : i32
    %195 = arith.addi %194, %c4_i32 : i32
    %196 = arith.index_cast %c4_i32 : i32 to index
    %c0_62 = arith.constant 0 : index
    %c0_63 = arith.constant 0 : index
    %197 = vector.load %arg2[%196, %c0_62, %c0_63] : memref<8x8x384xbf16, #tpu.memory_space<vmem>>, vector<1x8x384xbf16>
    %198 = vector.shape_cast %197 : vector<1x8x384xbf16> to vector<8x384xbf16>
    %199 = arith.extf %198 : vector<8x384xbf16> to vector<8x384xf32>
    %200 = arith.truncf %179 : vector<8x128xf32> to vector<8x128xbf16>
    %cst_64 = arith.constant dense<0.000000e+00> : vector<8x384xf32>
    %201 = tpu.matmul %200, %3, %cst_64 {dimension_numbers = #tpu.dot_dimension_numbers<[1], [0], [0], [1], [0, 0, 1, 1], [], []>} : vector<8x128xbf16>, vector<128x384xbf16>, vector<8x384xf32> -> vector<8x384xf32>
    %202 = vector.extract_strided_slice %199 {offsets = [0, 0], sizes = [8, 256], strides = [1, 1]} : vector<8x384xf32> to vector<8x256xf32>
    %203 = vector.extract_strided_slice %201 {offsets = [0, 0], sizes = [8, 256], strides = [1, 1]} : vector<8x384xf32> to vector<8x256xf32>
    %204 = arith.addf %202, %203 : vector<8x256xf32>
    %205 = arith.negf %204 : vector<8x256xf32>
    %206 = math.exp %205 : vector<8x256xf32>
    %cst_65 = arith.constant 1.000000e+00 : f32
    %207 = vector.broadcast %cst_65 : f32 to vector<8x256xf32>
    %208 = arith.addf %207, %206 : vector<8x256xf32>
    %209 = arith.divf %207, %208 : vector<8x256xf32>
    %210 = vector.extract_strided_slice %209 {offsets = [0, 0], sizes = [8, 128], strides = [1, 1]} : vector<8x256xf32> to vector<8x128xf32>
    %211 = vector.extract_strided_slice %209 {offsets = [0, 128], sizes = [8, 128], strides = [1, 1]} : vector<8x256xf32> to vector<8x128xf32>
    %212 = vector.extract_strided_slice %199 {offsets = [0, 256], sizes = [8, 128], strides = [1, 1]} : vector<8x384xf32> to vector<8x128xf32>
    %213 = vector.extract_strided_slice %201 {offsets = [0, 256], sizes = [8, 128], strides = [1, 1]} : vector<8x384xf32> to vector<8x128xf32>
    %214 = vector.broadcast %4 : vector<1x128xf32> to vector<8x128xf32>
    %215 = arith.addf %213, %214 : vector<8x128xf32>
    %216 = arith.mulf %210, %215 : vector<8x128xf32>
    %217 = arith.addf %212, %216 : vector<8x128xf32>
    %218 = math.tanh %217 : vector<8x128xf32>
    %cst_66 = arith.constant 1.000000e+00 : f32
    %219 = vector.broadcast %cst_66 : f32 to vector<8x128xf32>
    %220 = arith.subf %219, %211 : vector<8x128xf32>
    %221 = arith.mulf %220, %218 : vector<8x128xf32>
    %222 = arith.mulf %211, %179 : vector<8x128xf32>
    %223 = arith.addf %221, %222 : vector<8x128xf32>
    %c8_i32_67 = arith.constant 8 : i32
    %224 = arith.cmpi slt, %195, %c8_i32_67 : i32
    %225 = arith.select %224, %223, %179 : vector<8x128xf32>
    %226 = arith.truncf %225 : vector<8x128xf32> to vector<8x128xbf16>
    %cst_68 = arith.constant dense<0.000000e+00> : vector<8x128xf32>
    %227 = tpu.matmul %226, %5, %cst_68 {dimension_numbers = #tpu.dot_dimension_numbers<[1], [0], [0], [1], [0, 0, 1, 1], [], []>} : vector<8x128xbf16>, vector<128x128xbf16>, vector<8x128xf32> -> vector<8x128xf32>
    %228 = vector.broadcast %6 : vector<1x128xf32> to vector<8x128xf32>
    %229 = arith.addf %227, %228 : vector<8x128xf32>
    %cst_69 = arith.constant 0.000000e+00 : f32
    %230 = vector.broadcast %cst_69 : f32 to vector<8x128xf32>
    %231 = arith.maximumf %229, %230 : vector<8x128xf32>
    %232 = arith.truncf %231 : vector<8x128xf32> to vector<8x128xbf16>
    %cst_70 = arith.constant dense<0.000000e+00> : vector<8x128xf32>
    %233 = tpu.matmul %232, %7, %cst_70 {dimension_numbers = #tpu.dot_dimension_numbers<[1], [0], [0], [1], [0, 0, 1, 1], [], []>} : vector<8x128xbf16>, vector<128x128xbf16>, vector<8x128xf32> -> vector<8x128xf32>
    %234 = vector.broadcast %8 : vector<1x128xf32> to vector<8x128xf32>
    %235 = arith.addf %233, %234 : vector<8x128xf32>
    %236 = arith.index_cast %c4_i32 : i32 to index
    %c0_71 = arith.constant 0 : index
    %c0_72 = arith.constant 0 : index
    %237 = vector.load %arg10[%236, %c0_71, %c0_72] : memref<8x8x128xf32, #tpu.memory_space<vmem>>, vector<1x8x128xf32>
    %238 = vector.shape_cast %237 : vector<1x8x128xf32> to vector<8x128xf32>
    %239 = vector.shape_cast %235 : vector<8x128xf32> to vector<1x8x128xf32>
    tpu.vector_store %arg10[%236, %c0_71, %c0_72], %239 {strides = array<i32>} : memref<8x8x128xf32, #tpu.memory_space<vmem>>, vector<1x8x128xf32>,
    %c5_i32 = arith.constant 5 : i32
    %c8_i32_73 = arith.constant 8 : i32
    %240 = arith.muli %arg1, %c8_i32_73 : i32
    %241 = arith.addi %240, %c5_i32 : i32
    %242 = arith.index_cast %c5_i32 : i32 to index
    %c0_74 = arith.constant 0 : index
    %c0_75 = arith.constant 0 : index
    %243 = vector.load %arg2[%242, %c0_74, %c0_75] : memref<8x8x384xbf16, #tpu.memory_space<vmem>>, vector<1x8x384xbf16>
    %244 = vector.shape_cast %243 : vector<1x8x384xbf16> to vector<8x384xbf16>
    %245 = arith.extf %244 : vector<8x384xbf16> to vector<8x384xf32>
    %246 = arith.truncf %225 : vector<8x128xf32> to vector<8x128xbf16>
    %cst_76 = arith.constant dense<0.000000e+00> : vector<8x384xf32>
    %247 = tpu.matmul %246, %3, %cst_76 {dimension_numbers = #tpu.dot_dimension_numbers<[1], [0], [0], [1], [0, 0, 1, 1], [], []>} : vector<8x128xbf16>, vector<128x384xbf16>, vector<8x384xf32> -> vector<8x384xf32>
    %248 = vector.extract_strided_slice %245 {offsets = [0, 0], sizes = [8, 256], strides = [1, 1]} : vector<8x384xf32> to vector<8x256xf32>
    %249 = vector.extract_strided_slice %247 {offsets = [0, 0], sizes = [8, 256], strides = [1, 1]} : vector<8x384xf32> to vector<8x256xf32>
    %250 = arith.addf %248, %249 : vector<8x256xf32>
    %251 = arith.negf %250 : vector<8x256xf32>
    %252 = math.exp %251 : vector<8x256xf32>
    %cst_77 = arith.constant 1.000000e+00 : f32
    %253 = vector.broadcast %cst_77 : f32 to vector<8x256xf32>
    %254 = arith.addf %253, %252 : vector<8x256xf32>
    %255 = arith.divf %253, %254 : vector<8x256xf32>
    %256 = vector.extract_strided_slice %255 {offsets = [0, 0], sizes = [8, 128], strides = [1, 1]} : vector<8x256xf32> to vector<8x128xf32>
    %257 = vector.extract_strided_slice %255 {offsets = [0, 128], sizes = [8, 128], strides = [1, 1]} : vector<8x256xf32> to vector<8x128xf32>
    %258 = vector.extract_strided_slice %245 {offsets = [0, 256], sizes = [8, 128], strides = [1, 1]} : vector<8x384xf32> to vector<8x128xf32>
    %259 = vector.extract_strided_slice %247 {offsets = [0, 256], sizes = [8, 128], strides = [1, 1]} : vector<8x384xf32> to vector<8x128xf32>
    %260 = vector.broadcast %4 : vector<1x128xf32> to vector<8x128xf32>
    %261 = arith.addf %259, %260 : vector<8x128xf32>
    %262 = arith.mulf %256, %261 : vector<8x128xf32>
    %263 = arith.addf %258, %262 : vector<8x128xf32>
    %264 = math.tanh %263 : vector<8x128xf32>
    %cst_78 = arith.constant 1.000000e+00 : f32
    %265 = vector.broadcast %cst_78 : f32 to vector<8x128xf32>
    %266 = arith.subf %265, %257 : vector<8x128xf32>
    %267 = arith.mulf %266, %264 : vector<8x128xf32>
    %268 = arith.mulf %257, %225 : vector<8x128xf32>
    %269 = arith.addf %267, %268 : vector<8x128xf32>
    %c8_i32_79 = arith.constant 8 : i32
    %270 = arith.cmpi slt, %241, %c8_i32_79 : i32
    %271 = arith.select %270, %269, %225 : vector<8x128xf32>
    %272 = arith.truncf %271 : vector<8x128xf32> to vector<8x128xbf16>
    %cst_80 = arith.constant dense<0.000000e+00> : vector<8x128xf32>
    %273 = tpu.matmul %272, %5, %cst_80 {dimension_numbers = #tpu.dot_dimension_numbers<[1], [0], [0], [1], [0, 0, 1, 1], [], []>} : vector<8x128xbf16>, vector<128x128xbf16>, vector<8x128xf32> -> vector<8x128xf32>
    %274 = vector.broadcast %6 : vector<1x128xf32> to vector<8x128xf32>
    %275 = arith.addf %273, %274 : vector<8x128xf32>
    %cst_81 = arith.constant 0.000000e+00 : f32
    %276 = vector.broadcast %cst_81 : f32 to vector<8x128xf32>
    %277 = arith.maximumf %275, %276 : vector<8x128xf32>
    %278 = arith.truncf %277 : vector<8x128xf32> to vector<8x128xbf16>
    %cst_82 = arith.constant dense<0.000000e+00> : vector<8x128xf32>
    %279 = tpu.matmul %278, %7, %cst_82 {dimension_numbers = #tpu.dot_dimension_numbers<[1], [0], [0], [1], [0, 0, 1, 1], [], []>} : vector<8x128xbf16>, vector<128x128xbf16>, vector<8x128xf32> -> vector<8x128xf32>
    %280 = vector.broadcast %8 : vector<1x128xf32> to vector<8x128xf32>
    %281 = arith.addf %279, %280 : vector<8x128xf32>
    %282 = arith.index_cast %c5_i32 : i32 to index
    %c0_83 = arith.constant 0 : index
    %c0_84 = arith.constant 0 : index
    %283 = vector.load %arg10[%282, %c0_83, %c0_84] : memref<8x8x128xf32, #tpu.memory_space<vmem>>, vector<1x8x128xf32>
    %284 = vector.shape_cast %283 : vector<1x8x128xf32> to vector<8x128xf32>
    %285 = vector.shape_cast %281 : vector<8x128xf32> to vector<1x8x128xf32>
    tpu.vector_store %arg10[%282, %c0_83, %c0_84], %285 {strides = array<i32>} : memref<8x8x128xf32, #tpu.memory_space<vmem>>, vector<1x8x128xf32>,
    %c6_i32 = arith.constant 6 : i32
    %c8_i32_85 = arith.constant 8 : i32
    %286 = arith.muli %arg1, %c8_i32_85 : i32
    %287 = arith.addi %286, %c6_i32 : i32
    %288 = arith.index_cast %c6_i32 : i32 to index
    %c0_86 = arith.constant 0 : index
    %c0_87 = arith.constant 0 : index
    %289 = vector.load %arg2[%288, %c0_86, %c0_87] : memref<8x8x384xbf16, #tpu.memory_space<vmem>>, vector<1x8x384xbf16>
    %290 = vector.shape_cast %289 : vector<1x8x384xbf16> to vector<8x384xbf16>
    %291 = arith.extf %290 : vector<8x384xbf16> to vector<8x384xf32>
    %292 = arith.truncf %271 : vector<8x128xf32> to vector<8x128xbf16>
    %cst_88 = arith.constant dense<0.000000e+00> : vector<8x384xf32>
    %293 = tpu.matmul %292, %3, %cst_88 {dimension_numbers = #tpu.dot_dimension_numbers<[1], [0], [0], [1], [0, 0, 1, 1], [], []>} : vector<8x128xbf16>, vector<128x384xbf16>, vector<8x384xf32> -> vector<8x384xf32>
    %294 = vector.extract_strided_slice %291 {offsets = [0, 0], sizes = [8, 256], strides = [1, 1]} : vector<8x384xf32> to vector<8x256xf32>
    %295 = vector.extract_strided_slice %293 {offsets = [0, 0], sizes = [8, 256], strides = [1, 1]} : vector<8x384xf32> to vector<8x256xf32>
    %296 = arith.addf %294, %295 : vector<8x256xf32>
    %297 = arith.negf %296 : vector<8x256xf32>
    %298 = math.exp %297 : vector<8x256xf32>
    %cst_89 = arith.constant 1.000000e+00 : f32
    %299 = vector.broadcast %cst_89 : f32 to vector<8x256xf32>
    %300 = arith.addf %299, %298 : vector<8x256xf32>
    %301 = arith.divf %299, %300 : vector<8x256xf32>
    %302 = vector.extract_strided_slice %301 {offsets = [0, 0], sizes = [8, 128], strides = [1, 1]} : vector<8x256xf32> to vector<8x128xf32>
    %303 = vector.extract_strided_slice %301 {offsets = [0, 128], sizes = [8, 128], strides = [1, 1]} : vector<8x256xf32> to vector<8x128xf32>
    %304 = vector.extract_strided_slice %291 {offsets = [0, 256], sizes = [8, 128], strides = [1, 1]} : vector<8x384xf32> to vector<8x128xf32>
    %305 = vector.extract_strided_slice %293 {offsets = [0, 256], sizes = [8, 128], strides = [1, 1]} : vector<8x384xf32> to vector<8x128xf32>
    %306 = vector.broadcast %4 : vector<1x128xf32> to vector<8x128xf32>
    %307 = arith.addf %305, %306 : vector<8x128xf32>
    %308 = arith.mulf %302, %307 : vector<8x128xf32>
    %309 = arith.addf %304, %308 : vector<8x128xf32>
    %310 = math.tanh %309 : vector<8x128xf32>
    %cst_90 = arith.constant 1.000000e+00 : f32
    %311 = vector.broadcast %cst_90 : f32 to vector<8x128xf32>
    %312 = arith.subf %311, %303 : vector<8x128xf32>
    %313 = arith.mulf %312, %310 : vector<8x128xf32>
    %314 = arith.mulf %303, %271 : vector<8x128xf32>
    %315 = arith.addf %313, %314 : vector<8x128xf32>
    %c8_i32_91 = arith.constant 8 : i32
    %316 = arith.cmpi slt, %287, %c8_i32_91 : i32
    %317 = arith.select %316, %315, %271 : vector<8x128xf32>
    %318 = arith.truncf %317 : vector<8x128xf32> to vector<8x128xbf16>
    %cst_92 = arith.constant dense<0.000000e+00> : vector<8x128xf32>
    %319 = tpu.matmul %318, %5, %cst_92 {dimension_numbers = #tpu.dot_dimension_numbers<[1], [0], [0], [1], [0, 0, 1, 1], [], []>} : vector<8x128xbf16>, vector<128x128xbf16>, vector<8x128xf32> -> vector<8x128xf32>
    %320 = vector.broadcast %6 : vector<1x128xf32> to vector<8x128xf32>
    %321 = arith.addf %319, %320 : vector<8x128xf32>
    %cst_93 = arith.constant 0.000000e+00 : f32
    %322 = vector.broadcast %cst_93 : f32 to vector<8x128xf32>
    %323 = arith.maximumf %321, %322 : vector<8x128xf32>
    %324 = arith.truncf %323 : vector<8x128xf32> to vector<8x128xbf16>
    %cst_94 = arith.constant dense<0.000000e+00> : vector<8x128xf32>
    %325 = tpu.matmul %324, %7, %cst_94 {dimension_numbers = #tpu.dot_dimension_numbers<[1], [0], [0], [1], [0, 0, 1, 1], [], []>} : vector<8x128xbf16>, vector<128x128xbf16>, vector<8x128xf32> -> vector<8x128xf32>
    %326 = vector.broadcast %8 : vector<1x128xf32> to vector<8x128xf32>
    %327 = arith.addf %325, %326 : vector<8x128xf32>
    %328 = arith.index_cast %c6_i32 : i32 to index
    %c0_95 = arith.constant 0 : index
    %c0_96 = arith.constant 0 : index
    %329 = vector.load %arg10[%328, %c0_95, %c0_96] : memref<8x8x128xf32, #tpu.memory_space<vmem>>, vector<1x8x128xf32>
    %330 = vector.shape_cast %329 : vector<1x8x128xf32> to vector<8x128xf32>
    %331 = vector.shape_cast %327 : vector<8x128xf32> to vector<1x8x128xf32>
    tpu.vector_store %arg10[%328, %c0_95, %c0_96], %331 {strides = array<i32>} : memref<8x8x128xf32, #tpu.memory_space<vmem>>, vector<1x8x128xf32>,
    %c7_i32 = arith.constant 7 : i32
    %c8_i32_97 = arith.constant 8 : i32
    %332 = arith.muli %arg1, %c8_i32_97 : i32
    %333 = arith.addi %332, %c7_i32 : i32
    %334 = arith.index_cast %c7_i32 : i32 to index
    %c0_98 = arith.constant 0 : index
    %c0_99 = arith.constant 0 : index
    %335 = vector.load %arg2[%334, %c0_98, %c0_99] : memref<8x8x384xbf16, #tpu.memory_space<vmem>>, vector<1x8x384xbf16>
    %336 = vector.shape_cast %335 : vector<1x8x384xbf16> to vector<8x384xbf16>
    %337 = arith.extf %336 : vector<8x384xbf16> to vector<8x384xf32>
    %338 = arith.truncf %317 : vector<8x128xf32> to vector<8x128xbf16>
    %cst_100 = arith.constant dense<0.000000e+00> : vector<8x384xf32>
    %339 = tpu.matmul %338, %3, %cst_100 {dimension_numbers = #tpu.dot_dimension_numbers<[1], [0], [0], [1], [0, 0, 1, 1], [], []>} : vector<8x128xbf16>, vector<128x384xbf16>, vector<8x384xf32> -> vector<8x384xf32>
    %340 = vector.extract_strided_slice %337 {offsets = [0, 0], sizes = [8, 256], strides = [1, 1]} : vector<8x384xf32> to vector<8x256xf32>
    %341 = vector.extract_strided_slice %339 {offsets = [0, 0], sizes = [8, 256], strides = [1, 1]} : vector<8x384xf32> to vector<8x256xf32>
    %342 = arith.addf %340, %341 : vector<8x256xf32>
    %343 = arith.negf %342 : vector<8x256xf32>
    %344 = math.exp %343 : vector<8x256xf32>
    %cst_101 = arith.constant 1.000000e+00 : f32
    %345 = vector.broadcast %cst_101 : f32 to vector<8x256xf32>
    %346 = arith.addf %345, %344 : vector<8x256xf32>
    %347 = arith.divf %345, %346 : vector<8x256xf32>
    %348 = vector.extract_strided_slice %347 {offsets = [0, 0], sizes = [8, 128], strides = [1, 1]} : vector<8x256xf32> to vector<8x128xf32>
    %349 = vector.extract_strided_slice %347 {offsets = [0, 128], sizes = [8, 128], strides = [1, 1]} : vector<8x256xf32> to vector<8x128xf32>
    %350 = vector.extract_strided_slice %337 {offsets = [0, 256], sizes = [8, 128], strides = [1, 1]} : vector<8x384xf32> to vector<8x128xf32>
    %351 = vector.extract_strided_slice %339 {offsets = [0, 256], sizes = [8, 128], strides = [1, 1]} : vector<8x384xf32> to vector<8x128xf32>
    %352 = vector.broadcast %4 : vector<1x128xf32> to vector<8x128xf32>
    %353 = arith.addf %351, %352 : vector<8x128xf32>
    %354 = arith.mulf %348, %353 : vector<8x128xf32>
    %355 = arith.addf %350, %354 : vector<8x128xf32>
    %356 = math.tanh %355 : vector<8x128xf32>
    %cst_102 = arith.constant 1.000000e+00 : f32
    %357 = vector.broadcast %cst_102 : f32 to vector<8x128xf32>
    %358 = arith.subf %357, %349 : vector<8x128xf32>
    %359 = arith.mulf %358, %356 : vector<8x128xf32>
    %360 = arith.mulf %349, %317 : vector<8x128xf32>
    %361 = arith.addf %359, %360 : vector<8x128xf32>
    %c8_i32_103 = arith.constant 8 : i32
    %362 = arith.cmpi slt, %333, %c8_i32_103 : i32
    %363 = arith.select %362, %361, %317 : vector<8x128xf32>
    %364 = arith.truncf %363 : vector<8x128xf32> to vector<8x128xbf16>
    %cst_104 = arith.constant dense<0.000000e+00> : vector<8x128xf32>
    %365 = tpu.matmul %364, %5, %cst_104 {dimension_numbers = #tpu.dot_dimension_numbers<[1], [0], [0], [1], [0, 0, 1, 1], [], []>} : vector<8x128xbf16>, vector<128x128xbf16>, vector<8x128xf32> -> vector<8x128xf32>
    %366 = vector.broadcast %6 : vector<1x128xf32> to vector<8x128xf32>
    %367 = arith.addf %365, %366 : vector<8x128xf32>
    %cst_105 = arith.constant 0.000000e+00 : f32
    %368 = vector.broadcast %cst_105 : f32 to vector<8x128xf32>
    %369 = arith.maximumf %367, %368 : vector<8x128xf32>
    %370 = arith.truncf %369 : vector<8x128xf32> to vector<8x128xbf16>
    %cst_106 = arith.constant dense<0.000000e+00> : vector<8x128xf32>
    %371 = tpu.matmul %370, %7, %cst_106 {dimension_numbers = #tpu.dot_dimension_numbers<[1], [0], [0], [1], [0, 0, 1, 1], [], []>} : vector<8x128xbf16>, vector<128x128xbf16>, vector<8x128xf32> -> vector<8x128xf32>
    %372 = vector.broadcast %8 : vector<1x128xf32> to vector<8x128xf32>
    %373 = arith.addf %371, %372 : vector<8x128xf32>
    %374 = arith.index_cast %c7_i32 : i32 to index
    %c0_107 = arith.constant 0 : index
    %c0_108 = arith.constant 0 : index
    %375 = vector.load %arg10[%374, %c0_107, %c0_108] : memref<8x8x128xf32, #tpu.memory_space<vmem>>, vector<1x8x128xf32>
    %376 = vector.shape_cast %375 : vector<1x8x128xf32> to vector<8x128xf32>
    %377 = vector.shape_cast %373 : vector<8x128xf32> to vector<1x8x128xf32>
    tpu.vector_store %arg10[%374, %c0_107, %c0_108], %377 {strides = array<i32>} : memref<8x8x128xf32, #tpu.memory_space<vmem>>, vector<1x8x128xf32>,
    %c8_i32_109 = arith.constant 8 : i32
    %c0_110 = arith.constant 0 : index
    %c0_111 = arith.constant 0 : index
    %378 = vector.load %arg12[%c0_110, %c0_111] : memref<8x128xf32, #tpu.memory_space<vmem>>, vector<8x128xf32>
    tpu.vector_store %arg12[%c0_110, %c0_111], %363 {strides = array<i32>} : memref<8x128xf32, #tpu.memory_space<vmem>>, vector<8x128xf32>,
    %c0_112 = arith.constant 0 : index
    %c0_113 = arith.constant 0 : index
    %379 = vector.load %arg11[%c0_112, %c0_113] : memref<8x128xf32, #tpu.memory_space<vmem>>, vector<8x128xf32>
    tpu.vector_store %arg11[%c0_112, %c0_113], %363 {strides = array<i32>} : memref<8x128xf32, #tpu.memory_space<vmem>>, vector<8x128xf32>,
    return
  }
  func.func @transform_0(%arg0: i32, %arg1: i32) -> (i32, i32, i32) {
    %c0_i32 = arith.constant 0 : i32
    %c0_i32_0 = arith.constant 0 : i32
    return %arg1, %arg0, %c0_i32 : i32, i32, i32
  }
  func.func @transform_1(%arg0: i32, %arg1: i32) -> (i32, i32) {
    %c0_i32 = arith.constant 0 : i32
    %c0_i32_0 = arith.constant 0 : i32
    return %arg0, %c0_i32 : i32, i32
  }
  func.func @transform_2(%arg0: i32, %arg1: i32) -> (i32, i32) {
    %c0_i32 = arith.constant 0 : i32
    %c0_i32_0 = arith.constant 0 : i32
    %c0_i32_1 = arith.constant 0 : i32
    return %c0_i32, %c0_i32_0 : i32, i32
  }
  func.func @transform_3(%arg0: i32, %arg1: i32) -> (i32, i32) {
    %c0_i32 = arith.constant 0 : i32
    %c0_i32_0 = arith.constant 0 : i32
    %c0_i32_1 = arith.constant 0 : i32
    return %c0_i32, %c0_i32_0 : i32, i32
  }
  func.func @transform_4(%arg0: i32, %arg1: i32) -> (i32, i32) {
    %c0_i32 = arith.constant 0 : i32
    %c0_i32_0 = arith.constant 0 : i32
    %c0_i32_1 = arith.constant 0 : i32
    return %c0_i32, %c0_i32_0 : i32, i32
  }
  func.func @transform_5(%arg0: i32, %arg1: i32) -> (i32, i32) {
    %c0_i32 = arith.constant 0 : i32
    %c0_i32_0 = arith.constant 0 : i32
    %c0_i32_1 = arith.constant 0 : i32
    return %c0_i32, %c0_i32_0 : i32, i32
  }
  func.func @transform_6(%arg0: i32, %arg1: i32) -> (i32, i32) {
    %c0_i32 = arith.constant 0 : i32
    %c0_i32_0 = arith.constant 0 : i32
    %c0_i32_1 = arith.constant 0 : i32
    return %c0_i32, %c0_i32_0 : i32, i32
  }
  func.func @transform_7(%arg0: i32, %arg1: i32) -> (i32, i32) {
    %c0_i32 = arith.constant 0 : i32
    %c0_i32_0 = arith.constant 0 : i32
    %c0_i32_1 = arith.constant 0 : i32
    return %c0_i32, %c0_i32_0 : i32, i32
  }
  func.func @transform_8(%arg0: i32, %arg1: i32) -> (i32, i32, i32) {
    %c0_i32 = arith.constant 0 : i32
    %c0_i32_0 = arith.constant 0 : i32
    return %arg1, %arg0, %c0_i32 : i32, i32, i32
  }
  func.func @transform_9(%arg0: i32, %arg1: i32) -> (i32, i32) {
    %c0_i32 = arith.constant 0 : i32
    %c0_i32_0 = arith.constant 0 : i32
    return %arg0, %c0_i32 : i32, i32
  }
}

</mosaic_0001>

<llo_original>
// kernel: tpu_custom_call.1
$region0: #{tpu_custom_call.1}
  #allocation0 [shape = 'u32[]', space=smem, size = 0x4, offset = 0x4, fixed_abs, tag = 'smem constant byte address 0x4 - core index']
  #allocation1 [shape = 'u32[144,128]{1,0:T(1,128)}', space=vmem, size = 0x12000, scoped, tag = 'internal scratch']
  #allocation2 [shape = 'f32[8,128]{1,0:T(8,128)}', space=vmem, size = 0x1000, scoped, tag = 'scratch operand']
  %s0 = inlined_call_operand.hbm [shape: bf16[8,8,384], index: 0, kind: input, shape index: {}]
  %s1 = inlined_call_operand.hbm [shape: f32[8,128], index: 1, kind: input, shape index: {}]
  %s2 = inlined_call_operand.hbm [shape: bf16[128,384], index: 2, kind: input, shape index: {}]
  %s3 = inlined_call_operand.vmem [shape: f32[1,128], index: 3, kind: input, shape index: {}]
  %s4 = inlined_call_operand.hbm [shape: bf16[128,128], index: 4, kind: input, shape index: {}]
  %s5 = inlined_call_operand.vmem [shape: f32[1,128], index: 5, kind: input, shape index: {}]
  %s6 = inlined_call_operand.hbm [shape: bf16[128,128], index: 6, kind: input, shape index: {}]
  %s7 = inlined_call_operand.vmem [shape: f32[1,128], index: 7, kind: input, shape index: {}]
  %s8 = inlined_call_operand.hbm [shape: f32[8,8,128], index: 8, kind: output, shape index: {0}]
  %s9 = inlined_call_operand.hbm [shape: f32[8,128], index: 9, kind: output, shape index: {1}]
  %10 = xla_tuple %s8, %s9
  %s11 = sld [smem:[#allocation0]]
  $region74: #{tpu_custom_call.1} parent=0
    _
  %s13 = ssub.s32 1, %s11
  %s14 = scalar_select 0, %s13, %s11
  $region1: #{tpu_custom_call.1} parent=0
    #allocation3 [shape = 'u8[49152]{0}', space=vmem, size = 0xc000, scoped, tag = 'input window, operand 0, single buffered']
    #allocation4 [shape = 's32[1]{0}', space=sflag, size = 0x4, scoped, tag = 'scoped memory for tpu_custom_call.1']
    #allocation5 [shape = 's32[1]{0}', space=sflag, size = 0x4, scoped, tag = 'scoped memory for tpu_custom_call.1']
    #allocation6 [shape = 'u8[4096]{0}', space=vmem, size = 0x1000, scoped, tag = 'input window, operand 1, single buffered']
    #allocation7 [shape = 's32[1]{0}', space=sflag, size = 0x4, scoped, tag = 'scoped memory for tpu_custom_call.1']
    #allocation8 [shape = 'u8[98304]{0}', space=vmem, size = 0x18000, scoped, tag = 'input window, operand 2, single buffered']
    #allocation9 [shape = 'u8[32768]{0}', space=vmem, size = 0x8000, scoped, tag = 'input window, operand 4, single buffered']
    #allocation10 [shape = 's32[1]{0}', space=sflag, size = 0x4, scoped, tag = 'scoped memory for tpu_custom_call.1']
    #allocation11 [shape = 'u8[32768]{0}', space=vmem, size = 0x8000, scoped, tag = 'input window, operand 6, single buffered']
    #allocation12 [shape = 'u8[32768]{0}', space=vmem, size = 0x8000, scoped, tag = 'output window, operand 0, single buffered']
    #allocation13 [shape = 'u8[4096]{0}', space=vmem, size = 0x1000, scoped, tag = 'output window, operand 1, single buffered']
    #allocation14 [shape = 's32[1]{0}', space=sflag, size = 0x4, scoped, tag = 'scoped memory for tpu_custom_call.1']
    %15 = vsyncpa [#allocation4], 0
    %16 = vsyncpa [#allocation7], 0
    %17 = vsyncpa [#allocation10], 0
    %18 = vsyncpa [#allocation5], 0
    %19 = vsyncpa [#allocation14], 0
    // Predicated region
    $region2: #{tpu_custom_call.1} parent=1 // pred_check
      _
    $region3: #{tpu_custom_call.1} parent=1 // pred_check_branch
      %21 = sbr.rel (0) target = $region5
    $region4: #{tpu_custom_call.1} parent=1 // pred_region
      %s23 = ssub.s32 1536, 1536
      %24 = vsyncadd [#allocation4], %s23
      %s25 = sshll.u32 [#allocation3], 4
      %s26 = int_to_ptr.vmem [resolvable:$true] %s25
      %31 = dma.hbm_to_vmem [thread:$0]  %s0, 1536, %s26, [#allocation4], 192, 192, 12
    $region5: #{tpu_custom_call.1} parent=1 // pred_fallthru
      _
    // Predicated region
    $region6: #{tpu_custom_call.1} parent=1 // pred_check
      _
    $region7: #{tpu_custom_call.1} parent=1 // pred_check_branch
      %33 = sbr.rel (0) target = $region9
    $region8: #{tpu_custom_call.1} parent=1 // pred_region
      %s35 = ssub.s32 128, 128
      %36 = vsyncadd [#allocation7], %s35
      %s38 = sshll.u32 [#allocation6], 4
      %s39 = int_to_ptr.vmem [resolvable:$true] %s38
      %41 = dma.hbm_to_vmem [thread:$0]  %s1, 128, %s39, [#allocation7]
    $region9: #{tpu_custom_call.1} parent=1 // pred_fallthru
      _
    // Predicated region
    $region10: #{tpu_custom_call.1} parent=1 // pred_check
      _
    $region11: #{tpu_custom_call.1} parent=1 // pred_check_branch
      %43 = sbr.rel (0) target = $region13
    $region12: #{tpu_custom_call.1} parent=1 // pred_region
      %s45 = ssub.s32 3072, 3072
      %46 = vsyncadd [#allocation7], %s45
      %s47 = sshll.u32 [#allocation8], 4
      %s48 = int_to_ptr.vmem [resolvable:$true] %s47
      %53 = dma.hbm_to_vmem [thread:$0]  %s2, 3072, %s48, [#allocation7], 192, 192, 12
    $region13: #{tpu_custom_call.1} parent=1 // pred_fallthru
      _
    // Predicated region
    $region14: #{tpu_custom_call.1} parent=1 // pred_check
      _
    $region15: #{tpu_custom_call.1} parent=1 // pred_check_branch
      %55 = sbr.rel (0) target = $region17
    $region16: #{tpu_custom_call.1} parent=1 // pred_region
      _
    $region17: #{tpu_custom_call.1} parent=1 // pred_fallthru
      _
    // Predicated region
    $region18: #{tpu_custom_call.1} parent=1 // pred_check
      _
    $region19: #{tpu_custom_call.1} parent=1 // pred_check_branch
      %57 = sbr.rel (0) target = $region21
    $region20: #{tpu_custom_call.1} parent=1 // pred_region
      %s59 = ssub.s32 1024, 1024
      %60 = vsyncadd [#allocation10], %s59
      %s61 = sshll.u32 [#allocation9], 4
      %s62 = int_to_ptr.vmem [resolvable:$true] %s61
      %67 = dma.hbm_to_vmem [thread:$0]  %s4, 1024, %s62, [#allocation10], 64, 64, 4
    $region21: #{tpu_custom_call.1} parent=1 // pred_fallthru
      _
    // Predicated region
    $region22: #{tpu_custom_call.1} parent=1 // pred_check
      _
    $region23: #{tpu_custom_call.1} parent=1 // pred_check_branch
      %69 = sbr.rel (0) target = $region25
    $region24: #{tpu_custom_call.1} parent=1 // pred_region
      _
    $region25: #{tpu_custom_call.1} parent=1 // pred_fallthru
      _
    // Predicated region
    $region26: #{tpu_custom_call.1} parent=1 // pred_check
      _
    $region27: #{tpu_custom_call.1} parent=1 // pred_check_branch
      %71 = sbr.rel (0) target = $region29
    $region28: #{tpu_custom_call.1} parent=1 // pred_region
      %s73 = ssub.s32 1024, 1024
      %74 = vsyncadd [#allocation10], %s73
      %s75 = sshll.u32 [#allocation11], 4
      %s76 = int_to_ptr.vmem [resolvable:$true] %s75
      %81 = dma.hbm_to_vmem [thread:$0]  %s6, 1024, %s76, [#allocation10], 64, 64, 4
    $region29: #{tpu_custom_call.1} parent=1 // pred_fallthru
      _
    // Predicated region
    $region30: #{tpu_custom_call.1} parent=1 // pred_check
      _
    $region31: #{tpu_custom_call.1} parent=1 // pred_check_branch
      %83 = sbr.rel (0) target = $region33
    $region32: #{tpu_custom_call.1} parent=1 // pred_region
      _
    $region33: #{tpu_custom_call.1} parent=1 // pred_fallthru
      _
    // Predicated region
    $region34: #{tpu_custom_call.1} parent=1 // pred_check
      _
    $region35: #{tpu_custom_call.1} parent=1 // pred_check_branch
      %85 = sbr.rel (0) target = $region37
    $region36: #{tpu_custom_call.1} parent=1 // pred_region
      %86 = dma.done [#allocation4], 1536
    $region37: #{tpu_custom_call.1} parent=1 // pred_fallthru
      _
    // Predicated region
    $region38: #{tpu_custom_call.1} parent=1 // pred_check
      _
    $region39: #{tpu_custom_call.1} parent=1 // pred_check_branch
      %88 = sbr.rel (0) target = $region41
    $region40: #{tpu_custom_call.1} parent=1 // pred_region
      %89 = dma.done [#allocation7], 128
    $region41: #{tpu_custom_call.1} parent=1 // pred_fallthru
      _
    // Predicated region
    $region42: #{tpu_custom_call.1} parent=1 // pred_check
      _
    $region43: #{tpu_custom_call.1} parent=1 // pred_check_branch
      %91 = sbr.rel (0) target = $region45
    $region44: #{tpu_custom_call.1} parent=1 // pred_region
      %92 = dma.done [#allocation7], 3072
    $region45: #{tpu_custom_call.1} parent=1 // pred_fallthru
      _
    // Predicated region
    $region46: #{tpu_custom_call.1} parent=1 // pred_check
      _
    $region47: #{tpu_custom_call.1} parent=1 // pred_check_branch
      %94 = sbr.rel (0) target = $region49
    $region48: #{tpu_custom_call.1} parent=1 // pred_region
      %95 = dma.done [#allocation10], 1024
    $region49: #{tpu_custom_call.1} parent=1 // pred_fallthru
      _
    // Predicated region
    $region50: #{tpu_custom_call.1} parent=1 // pred_check
      _
    $region51: #{tpu_custom_call.1} parent=1 // pred_check_branch
      %97 = sbr.rel (0) target = $region53
    $region52: #{tpu_custom_call.1} parent=1 // pred_region
      %98 = dma.done [#allocation10], 1024
    $region53: #{tpu_custom_call.1} parent=1 // pred_fallthru
      _
    %p100 = scmp.eq.s32.totalorder 0, 0
    // Predicated region
    $region54: #{tpu_custom_call.1} parent=1 // pred_check
      %p101 = pneg %p100
    $region55: #{tpu_custom_call.1} parent=1 // pred_check_branch
      %103 = sbr.rel (%p101) target = $region57
    $region56: #{tpu_custom_call.1} parent=1 // pred_region
      %v104 = vld [vmem:[#allocation6] sm:$0xff]
      %105 = vst [vmem:[#allocation2] sm:$0xff] %v104
    $region57: #{tpu_custom_call.1} parent=1 // pred_fallthru
      _
    %v106 = vld [vmem:[#allocation8] sm:$0xff]
    %v107 = vld [vmem:[#allocation8 + $0x8] sm:$0xf]
    %v108 = vld [vmem:[#allocation8 + $0xc] sm:$0xff]
    %v109 = vld [vmem:[#allocation8 + $0x14] sm:$0xf]
    %v110 = vld [vmem:[#allocation8 + $0x18] sm:$0xff]
    %v111 = vld [vmem:[#allocation8 + $0x20] sm:$0xf]
    %v112 = vld [vmem:[#allocation8 + $0x24] sm:$0xff]
    %v113 = vld [vmem:[#allocation8 + $0x2c] sm:$0xf]
    %v114 = vld [vmem:[#allocation8 + $0x30] sm:$0xff]
    %v115 = vld [vmem:[#allocation8 + $0x38] sm:$0xf]
    %v116 = vld [vmem:[#allocation8 + $0x3c] sm:$0xff]
    %v117 = vld [vmem:[#allocation8 + $0x44] sm:$0xf]
    %v118 = vld [vmem:[#allocation8 + $0x48] sm:$0xff]
    %v119 = vld [vmem:[#allocation8 + $0x50] sm:$0xf]
    %v120 = vld [vmem:[#allocation8 + $0x54] sm:$0xff]
    %v121 = vld [vmem:[#allocation8 + $0x5c] sm:$0xf]
    %v122 = vld [vmem:[#allocation8 + $0x60] sm:$0xff]
    %v123 = vld [vmem:[#allocation8 + $0x68] sm:$0xf]
    %v124 = vld [vmem:[#allocation8 + $0x6c] sm:$0xff]
    %v125 = vld [vmem:[#allocation8 + $0x74] sm:$0xf]
    %v126 = vld [vmem:[#allocation8 + $0x78] sm:$0xff]
    %v127 = vld [vmem:[#allocation8 + $0x80] sm:$0xf]
    %v128 = vld [vmem:[#allocation8 + $0x84] sm:$0xff]
    %v129 = vld [vmem:[#allocation8 + $0x8c] sm:$0xf]
    %v130 = vld [vmem:[#allocation8 + $0x90] sm:$0xff]
    %v131 = vld [vmem:[#allocation8 + $0x98] sm:$0xf]
    %v132 = vld [vmem:[#allocation8 + $0x9c] sm:$0xff]
    %v133 = vld [vmem:[#allocation8 + $0xa4] sm:$0xf]
    %v134 = vld [vmem:[#allocation8 + $0xa8] sm:$0xff]
    %v135 = vld [vmem:[#allocation8 + $0xb0] sm:$0xf]
    %v136 = vld [vmem:[#allocation8 + $0xb4] sm:$0xff]
    %v137 = vld [vmem:[#allocation8 + $0xbc] sm:$0xf]
    %v138 = vld [vmem:[%s3] sm:$0x1]
    %v139 = vld [vmem:[#allocation9] sm:$0xf]
    %v140 = vld [vmem:[#allocation9 + $0x4] sm:$0xf]
    %v141 = vld [vmem:[#allocation9 + $0x8] sm:$0xf]
    %v142 = vld [vmem:[#allocation9 + $0xc] sm:$0xf]
    %v143 = vld [vmem:[#allocation9 + $0x10] sm:$0xf]
    %v144 = vld [vmem:[#allocation9 + $0x14] sm:$0xf]
    %v145 = vld [vmem:[#allocation9 + $0x18] sm:$0xf]
    %v146 = vld [vmem:[#allocation9 + $0x1c] sm:$0xf]
    %v147 = vld [vmem:[#allocation9 + $0x20] sm:$0xf]
    %v148 = vld [vmem:[#allocation9 + $0x24] sm:$0xf]
    %v149 = vld [vmem:[#allocation9 + $0x28] sm:$0xf]
    %v150 = vld [vmem:[#allocation9 + $0x2c] sm:$0xf]
    %v151 = vld [vmem:[#allocation9 + $0x30] sm:$0xf]
    %v152 = vld [vmem:[#allocation9 + $0x34] sm:$0xf]
    %v153 = vld [vmem:[#allocation9 + $0x38] sm:$0xf]
    %v154 = vld [vmem:[#allocation9 + $0x3c] sm:$0xf]
    %v155 = vld [vmem:[%s5] sm:$0x1]
    %v156 = vld [vmem:[#allocation11] sm:$0xf]
    %v157 = vld [vmem:[#allocation11 + $0x4] sm:$0xf]
    %v158 = vld [vmem:[#allocation11 + $0x8] sm:$0xf]
    %v159 = vld [vmem:[#allocation11 + $0xc] sm:$0xf]
    %v160 = vld [vmem:[#allocation11 + $0x10] sm:$0xf]
    %v161 = vld [vmem:[#allocation11 + $0x14] sm:$0xf]
    %v162 = vld [vmem:[#allocation11 + $0x18] sm:$0xf]
    %v163 = vld [vmem:[#allocation11 + $0x1c] sm:$0xf]
    %v164 = vld [vmem:[#allocation11 + $0x20] sm:$0xf]
    %v165 = vld [vmem:[#allocation11 + $0x24] sm:$0xf]
    %v166 = vld [vmem:[#allocation11 + $0x28] sm:$0xf]
    %v167 = vld [vmem:[#allocation11 + $0x2c] sm:$0xf]
    %v168 = vld [vmem:[#allocation11 + $0x30] sm:$0xf]
    %v169 = vld [vmem:[#allocation11 + $0x34] sm:$0xf]
    %v170 = vld [vmem:[#allocation11 + $0x38] sm:$0xf]
    %v171 = vld [vmem:[#allocation11 + $0x3c] sm:$0xf]
    %v172 = vld [vmem:[%s7] sm:$0x1]
    %v173 = vld [vmem:[#allocation2] sm:$0xff]
    %s174 = smul.u32 0, 8
    %v175 = vld [vmem:[#allocation3] sm:$0xff]
    %v176 = vld [vmem:[#allocation3 + $0x8] sm:$0xf]
    %v177 = vunpack.c.l.bf16 %v175
    %v178 = vunpack.c.h.bf16 %v175
    %v179 = vunpack.c.l.bf16 %v176
    %v180 = vpack.c.bf16 %v173, %v173
    %v213 = vunpack.c.l.b16 %v106
    %v214 = vunpack.c.h.b16 %v106
    %v215 = vunpack.c.l.b16 %v107
    %v216 = vunpack.c.l.b16 %v108
    %v217 = vunpack.c.h.b16 %v108
    %v218 = vunpack.c.l.b16 %v109
    %v219 = vunpack.c.l.b16 %v110
    %v220 = vunpack.c.h.b16 %v110
    %v221 = vunpack.c.l.b16 %v111
    %v222 = vunpack.c.l.b16 %v112
    %v223 = vunpack.c.h.b16 %v112
    %v224 = vunpack.c.l.b16 %v113
    %v225 = vunpack.c.l.b16 %v114
    %v226 = vunpack.c.h.b16 %v114
    %v227 = vunpack.c.l.b16 %v115
    %v228 = vunpack.c.l.b16 %v116
    %v229 = vunpack.c.h.b16 %v116
    %v230 = vunpack.c.l.b16 %v117
    %v231 = vunpack.c.l.b16 %v118
    %v232 = vunpack.c.h.b16 %v118
    %v233 = vunpack.c.l.b16 %v119
    %v234 = vunpack.c.l.b16 %v120
    %v235 = vunpack.c.h.b16 %v120
    %v236 = vunpack.c.l.b16 %v121
    %v237 = vunpack.c.l.b16 %v122
    %v238 = vunpack.c.h.b16 %v122
    %v239 = vunpack.c.l.b16 %v123
    %v240 = vunpack.c.l.b16 %v124
    %v241 = vunpack.c.h.b16 %v124
    %v242 = vunpack.c.l.b16 %v125
    %v243 = vunpack.c.l.b16 %v126
    %v244 = vunpack.c.h.b16 %v126
    %v245 = vunpack.c.l.b16 %v127
    %v246 = vunpack.c.l.b16 %v128
    %v247 = vunpack.c.h.b16 %v128
    %v248 = vunpack.c.l.b16 %v129
    %v249 = vunpack.c.l.b16 %v130
    %v250 = vunpack.c.h.b16 %v130
    %v251 = vunpack.c.l.b16 %v131
    %v252 = vunpack.c.l.b16 %v132
    %v253 = vunpack.c.h.b16 %v132
    %v254 = vunpack.c.l.b16 %v133
    %v255 = vunpack.c.l.b16 %v134
    %v256 = vunpack.c.h.b16 %v134
    %v257 = vunpack.c.l.b16 %v135
    %v258 = vunpack.c.l.b16 %v136
    %v259 = vunpack.c.h.b16 %v136
    %v260 = vunpack.c.l.b16 %v137
    %v261 = vpack.c.b16 %v216, %v213
    %v262 = vpack.c.b16 %v217, %v214
    %v263 = vpack.c.b16 %v218, %v215
    %v264 = vpack.c.b16 %v222, %v219
    %v265 = vpack.c.b16 %v223, %v220
    %v266 = vpack.c.b16 %v224, %v221
    %v267 = vpack.c.b16 %v228, %v225
    %v268 = vpack.c.b16 %v229, %v226
    %v269 = vpack.c.b16 %v230, %v227
    %v270 = vpack.c.b16 %v234, %v231
    %v271 = vpack.c.b16 %v235, %v232
    %v272 = vpack.c.b16 %v236, %v233
    %v273 = vpack.c.b16 %v240, %v237
    %v274 = vpack.c.b16 %v241, %v238
    %v275 = vpack.c.b16 %v242, %v239
    %v276 = vpack.c.b16 %v246, %v243
    %v277 = vpack.c.b16 %v247, %v244
    %v278 = vpack.c.b16 %v248, %v245
    %v279 = vpack.c.b16 %v252, %v249
    %v280 = vpack.c.b16 %v253, %v250
    %v281 = vpack.c.b16 %v254, %v251
    %v282 = vpack.c.b16 %v258, %v255
    %v283 = vpack.c.b16 %v259, %v256
    %v284 = vpack.c.b16 %v260, %v257
    %309 = vmatprep.subr.bf16.mxu0 %v283
    %310 = vmatpush1.bf16.msra.mxu0 %v282
    %311 = vmatprep.subr.bf16.mxu0 %v280
    %312 = vmatpush1.bf16.msra.mxu0 %v279
    %313 = vmatprep.subr.bf16.mxu0 %v277
    %314 = vmatpush1.bf16.msra.mxu0 %v276
    %315 = vmatprep.subr.bf16.mxu0 %v274
    %316 = vmatpush1.bf16.msra.mxu0 %v273
    %317 = vmatprep.subr.bf16.mxu0 %v271
    %318 = vmatpush1.bf16.msra.mxu0 %v270
    %319 = vmatprep.subr.bf16.mxu0 %v268
    %320 = vmatpush1.bf16.msra.mxu0 %v267
    %321 = vmatprep.subr.bf16.mxu0 %v265
    %322 = vmatpush1.bf16.msra.mxu0 %v264
    %323 = vmatprep.subr.bf16.mxu0 %v262
    %324 = vmatpush1.bf16.msra.mxu0 %v261
    %325 = vmatprep.subr.bf16.mxu0 0
    %326 = vmatpush2.bf16.msra.mxu0 0
    %327 = vmatprep.subr.bf16.mxu0 0
    %328 = vmatpush2.bf16.msra.mxu0 0
    %329 = vmatprep.subr.bf16.mxu0 0
    %330 = vmatpush2.bf16.msra.mxu0 0
    %331 = vmatprep.subr.bf16.mxu0 0
    %332 = vmatpush2.bf16.msra.mxu0 0
    %333 = vmatprep.subr.bf16.mxu0 0
    %334 = vmatpush2.bf16.msra.mxu0 0
    %335 = vmatprep.subr.bf16.mxu0 0
    %336 = vmatpush2.bf16.msra.mxu0 0
    %337 = vmatprep.subr.bf16.mxu0 0
    %338 = vmatpush2.bf16.msra.mxu0 0
    %339 = vmatprep.subr.bf16.mxu0 0
    %340 = vmatpush2.bf16.msra.mxu0 0
    %341 = vmatprep.mubr.bf16.mxu0 0
    %342 = vmatmul.mubr.bf16.gmra.mxu0 %v180
    %v343 = vpop.f32.mrf.mxu0
    %v344 = vadd.f32 0.0, %v343
    %v345 = vpop.f32.mrf.mxu0
    %v346 = vadd.f32 0.0, %v345
    %v347 = vpop.f32.mrf.mxu0
    %v348 = vpop.f32.mrf.mxu0
    %349 = vdwg.mxu0
    %350 = vmatprep.subr.bf16.mxu0 0
    %351 = vmatpush1.bf16.msra.mxu0 %v284
    %352 = vmatprep.subr.bf16.mxu0 0
    %353 = vmatpush1.bf16.msra.mxu0 %v281
    %354 = vmatprep.subr.bf16.mxu0 0
    %355 = vmatpush1.bf16.msra.mxu0 %v278
    %356 = vmatprep.subr.bf16.mxu0 0
    %357 = vmatpush1.bf16.msra.mxu0 %v275
    %358 = vmatprep.subr.bf16.mxu0 0
    %359 = vmatpush1.bf16.msra.mxu0 %v272
    %360 = vmatprep.subr.bf16.mxu0 0
    %361 = vmatpush1.bf16.msra.mxu0 %v269
    %362 = vmatprep.subr.bf16.mxu0 0
    %363 = vmatpush1.bf16.msra.mxu0 %v266
    %364 = vmatprep.subr.bf16.mxu0 0
    %365 = vmatpush1.bf16.msra.mxu0 %v263
    %366 = vmatprep.subr.bf16.mxu0 0
    %367 = vmatpush2.bf16.msra.mxu0 0
    %368 = vmatprep.subr.bf16.mxu0 0
    %369 = vmatpush2.bf16.msra.mxu0 0
    %370 = vmatprep.subr.bf16.mxu0 0
    %371 = vmatpush2.bf16.msra.mxu0 0
    %372 = vmatprep.subr.bf16.mxu0 0
    %373 = vmatpush2.bf16.msra.mxu0 0
    %374 = vmatprep.subr.bf16.mxu0 0
    %375 = vmatpush2.bf16.msra.mxu0 0
    %376 = vmatprep.subr.bf16.mxu0 0
    %377 = vmatpush2.bf16.msra.mxu0 0
    %378 = vmatprep.subr.bf16.mxu0 0
    %379 = vmatpush2.bf16.msra.mxu0 0
    %380 = vmatprep.subr.bf16.mxu0 0
    %381 = vmatpush2.bf16.msra.mxu0 0
    %382 = vmatprep.mubr.bf16.mxu0 0
    %383 = vmatmul.mubr.bf16.gmra.mxu0 %v180
    %v384 = vpop.f32.mrf.mxu0
    %v385 = vadd.f32 0.0, %v384
    %v386 = vpop.f32.mrf.mxu0
    %v387 = vpop.f32.mrf.mxu0
    %v388 = vpop.f32.mrf.mxu0
    %389 = vdwg.mxu0
    %v390 = vadd.f32 %v177, %v344
    %v391 = vadd.f32 %v178, %v346
    %v392 = vxor.u32 %v390, 2147483648
    %v393 = vxor.u32 %v391, 2147483648
    %v394 = vmul.f32 %v392, 1.442695
    %v395 = vpow.pop %v394
    %v396 = vmul.f32 %v393, 1.442695
    %v397 = vpow.pop %v396
    %v398 = vadd.f32 %v395, 1.0
    %v399 = vadd.f32 %v397, 1.0
    %v400 = vrcp.pop %v398
    %v401 = vmul.f32 1.0, %v400
    %v402 = vrcp.pop %v399
    %v403 = vmul.f32 1.0, %v402
    %v405 = vlaneseq
    %v406 = vshrl.u32 %v405, 7
    %v407 = vsub.s32 0, %v406
    %v408 = vrot.slane %v138, %v407
    %v410 = vadd.f32 %v385, %v408
    %v411 = vmul.f32 %v401, %v410
    %v412 = vadd.f32 %v179, %v411
    %v413 = vtanh.pop %v412
    %v414 = vsub.f32 1.0, %v403
    %v415 = vmul.f32 %v414, %v413
    %v416 = vmul.f32 %v403, %v173
    %v417 = vadd.f32 %v415, %v416
    %p418 = scmp.lt.s32.totalorder %s174, 8
    %s419 = scalar_select %p418, 1, 0
    %v420 = vstv %s419
    %vm421 = vcmp.eq.s32.totalorder %v420, 1
    %v422 = vsel %vm421, %v417, %v173
    %v423 = vpack.c.bf16 %v422, %v422
    %v425 = vlaneseq
    %v426 = vshrl.u32 %v425, 7
    %v427 = vsub.s32 0, %v426
    %v428 = vrot.slane %v155, %v427
    %v446 = vunpack.c.l.b16 %v139
    %v447 = vunpack.c.l.b16 %v140
    %v448 = vunpack.c.l.b16 %v141
    %v449 = vunpack.c.l.b16 %v142
    %v450 = vunpack.c.l.b16 %v143
    %v451 = vunpack.c.l.b16 %v144
    %v452 = vunpack.c.l.b16 %v145
    %v453 = vunpack.c.l.b16 %v146
    %v454 = vunpack.c.l.b16 %v147
    %v455 = vunpack.c.l.b16 %v148
    %v456 = vunpack.c.l.b16 %v149
    %v457 = vunpack.c.l.b16 %v150
    %v458 = vunpack.c.l.b16 %v151
    %v459 = vunpack.c.l.b16 %v152
    %v460 = vunpack.c.l.b16 %v153
    %v461 = vunpack.c.l.b16 %v154
    %v462 = vpack.c.b16 %v447, %v446
    %v463 = vpack.c.b16 %v449, %v448
    %v464 = vpack.c.b16 %v451, %v450
    %v465 = vpack.c.b16 %v453, %v452
    %v466 = vpack.c.b16 %v455, %v454
    %v467 = vpack.c.b16 %v457, %v456
    %v468 = vpack.c.b16 %v459, %v458
    %v469 = vpack.c.b16 %v461, %v460
    %478 = vmatprep.subr.bf16.mxu0 0
    %479 = vmatpush1.bf16.msra.mxu0 %v469
    %480 = vmatprep.subr.bf16.mxu0 0
    %481 = vmatpush1.bf16.msra.mxu0 %v468
    %482 = vmatprep.subr.bf16.mxu0 0
    %483 = vmatpush1.bf16.msra.mxu0 %v467
    %484 = vmatprep.subr.bf16.mxu0 0
    %485 = vmatpush1.bf16.msra.mxu0 %v466
    %486 = vmatprep.subr.bf16.mxu0 0
    %487 = vmatpush1.bf16.msra.mxu0 %v465
    %488 = vmatprep.subr.bf16.mxu0 0
    %489 = vmatpush1.bf16.msra.mxu0 %v464
    %490 = vmatprep.subr.bf16.mxu0 0
    %491 = vmatpush1.bf16.msra.mxu0 %v463
    %492 = vmatprep.subr.bf16.mxu0 0
    %493 = vmatpush1.bf16.msra.mxu0 %v462
    %494 = vmatprep.subr.bf16.mxu0 0
    %495 = vmatpush2.bf16.msra.mxu0 0
    %496 = vmatprep.subr.bf16.mxu0 0
    %497 = vmatpush2.bf16.msra.mxu0 0
    %498 = vmatprep.subr.bf16.mxu0 0
    %499 = vmatpush2.bf16.msra.mxu0 0
    %500 = vmatprep.subr.bf16.mxu0 0
    %501 = vmatpush2.bf16.msra.mxu0 0
    %502 = vmatprep.subr.bf16.mxu0 0
    %503 = vmatpush2.bf16.msra.mxu0 0
    %504 = vmatprep.subr.bf16.mxu0 0
    %505 = vmatpush2.bf16.msra.mxu0 0
    %506 = vmatprep.subr.bf16.mxu0 0
    %507 = vmatpush2.bf16.msra.mxu0 0
    %508 = vmatprep.subr.bf16.mxu0 0
    %509 = vmatpush2.bf16.msra.mxu0 0
    %510 = vmatprep.mubr.bf16.mxu0 0
    %511 = vmatmul.mubr.bf16.gmra.mxu0 %v423
    %v512 = vpop.f32.mrf.mxu0
    %v513 = vadd.f32 %v428, %v512
    %v514 = vpop.f32.mrf.mxu0
    %v515 = vpop.f32.mrf.mxu0
    %v516 = vpop.f32.mrf.mxu0
    %517 = vdwg.mxu0
    %v518 = vmax.f32 %v513, 0.0
    %v519 = vpack.c.bf16 %v518, %v518
    %v521 = vlaneseq
    %v522 = vshrl.u32 %v521, 7
    %v523 = vsub.s32 0, %v522
    %v524 = vrot.slane %v172, %v523
    %v542 = vunpack.c.l.b16 %v156
    %v543 = vunpack.c.l.b16 %v157
    %v544 = vunpack.c.l.b16 %v158
    %v545 = vunpack.c.l.b16 %v159
    %v546 = vunpack.c.l.b16 %v160
    %v547 = vunpack.c.l.b16 %v161
    %v548 = vunpack.c.l.b16 %v162
    %v549 = vunpack.c.l.b16 %v163
    %v550 = vunpack.c.l.b16 %v164
    %v551 = vunpack.c.l.b16 %v165
    %v552 = vunpack.c.l.b16 %v166
    %v553 = vunpack.c.l.b16 %v167
    %v554 = vunpack.c.l.b16 %v168
    %v555 = vunpack.c.l.b16 %v169
    %v556 = vunpack.c.l.b16 %v170
    %v557 = vunpack.c.l.b16 %v171
    %v558 = vpack.c.b16 %v543, %v542
    %v559 = vpack.c.b16 %v545, %v544
    %v560 = vpack.c.b16 %v547, %v546
    %v561 = vpack.c.b16 %v549, %v548
    %v562 = vpack.c.b16 %v551, %v550
    %v563 = vpack.c.b16 %v553, %v552
    %v564 = vpack.c.b16 %v555, %v554
    %v565 = vpack.c.b16 %v557, %v556
    %574 = vmatprep.subr.bf16.mxu0 0
    %575 = vmatpush1.bf16.msra.mxu0 %v565
    %576 = vmatprep.subr.bf16.mxu0 0
    %577 = vmatpush1.bf16.msra.mxu0 %v564
    %578 = vmatprep.subr.bf16.mxu0 0
    %579 = vmatpush1.bf16.msra.mxu0 %v563
    %580 = vmatprep.subr.bf16.mxu0 0
    %581 = vmatpush1.bf16.msra.mxu0 %v562
    %582 = vmatprep.subr.bf16.mxu0 0
    %583 = vmatpush1.bf16.msra.mxu0 %v561
    %584 = vmatprep.subr.bf16.mxu0 0
    %585 = vmatpush1.bf16.msra.mxu0 %v560
    %586 = vmatprep.subr.bf16.mxu0 0
    %587 = vmatpush1.bf16.msra.mxu0 %v559
    %588 = vmatprep.subr.bf16.mxu0 0
    %589 = vmatpush1.bf16.msra.mxu0 %v558
    %590 = vmatprep.subr.bf16.mxu0 0
    %591 = vmatpush2.bf16.msra.mxu0 0
    %592 = vmatprep.subr.bf16.mxu0 0
    %593 = vmatpush2.bf16.msra.mxu0 0
    %594 = vmatprep.subr.bf16.mxu0 0
    %595 = vmatpush2.bf16.msra.mxu0 0
    %596 = vmatprep.subr.bf16.mxu0 0
    %597 = vmatpush2.bf16.msra.mxu0 0
    %598 = vmatprep.subr.bf16.mxu0 0
    %599 = vmatpush2.bf16.msra.mxu0 0
    %600 = vmatprep.subr.bf16.mxu0 0
    %601 = vmatpush2.bf16.msra.mxu0 0
    %602 = vmatprep.subr.bf16.mxu0 0
    %603 = vmatpush2.bf16.msra.mxu0 0
    %604 = vmatprep.subr.bf16.mxu0 0
    %605 = vmatpush2.bf16.msra.mxu0 0
    %606 = vmatprep.mubr.bf16.mxu0 0
    %607 = vmatmul.mubr.bf16.gmra.mxu0 %v519
    %v608 = vpop.f32.mrf.mxu0
    %v609 = vadd.f32 %v524, %v608
    %v610 = vpop.f32.mrf.mxu0
    %v611 = vpop.f32.mrf.mxu0
    %v612 = vpop.f32.mrf.mxu0
    %613 = vdwg.mxu0
    %614 = vst [vmem:[#allocation12] sm:$0xff] %v609
    %s615 = sadd.s32 %s174, 1
    %s616 = scalar_lea.vmem [#allocation3], 12
    %v617 = vld [vmem:[%s616] sm:$0xff]
    %v618 = vld [vmem:[%s616 + $0x8] sm:$0xf]
    %v619 = vunpack.c.l.bf16 %v617
    %v620 = vunpack.c.h.bf16 %v617
    %v621 = vunpack.c.l.bf16 %v618
    %622 = vmatprep.subr.bf16.mxu0 %v283
    %623 = vmatpush1.bf16.msra.mxu0 %v282
    %624 = vmatprep.subr.bf16.mxu0 %v280
    %625 = vmatpush1.bf16.msra.mxu0 %v279
    %626 = vmatprep.subr.bf16.mxu0 %v277
    %627 = vmatpush1.bf16.msra.mxu0 %v276
    %628 = vmatprep.subr.bf16.mxu0 %v274
    %629 = vmatpush1.bf16.msra.mxu0 %v273
    %630 = vmatprep.subr.bf16.mxu0 %v271
    %631 = vmatpush1.bf16.msra.mxu0 %v270
    %632 = vmatprep.subr.bf16.mxu0 %v268
    %633 = vmatpush1.bf16.msra.mxu0 %v267
    %634 = vmatprep.subr.bf16.mxu0 %v265
    %635 = vmatpush1.bf16.msra.mxu0 %v264
    %636 = vmatprep.subr.bf16.mxu0 %v262
    %637 = vmatpush1.bf16.msra.mxu0 %v261
    %638 = vmatprep.subr.bf16.mxu0 0
    %639 = vmatpush2.bf16.msra.mxu0 0
    %640 = vmatprep.subr.bf16.mxu0 0
    %641 = vmatpush2.bf16.msra.mxu0 0
    %642 = vmatprep.subr.bf16.mxu0 0
    %643 = vmatpush2.bf16.msra.mxu0 0
    %644 = vmatprep.subr.bf16.mxu0 0
    %645 = vmatpush2.bf16.msra.mxu0 0
    %646 = vmatprep.subr.bf16.mxu0 0
    %647 = vmatpush2.bf16.msra.mxu0 0
    %648 = vmatprep.subr.bf16.mxu0 0
    %649 = vmatpush2.bf16.msra.mxu0 0
    %650 = vmatprep.subr.bf16.mxu0 0
    %651 = vmatpush2.bf16.msra.mxu0 0
    %652 = vmatprep.subr.bf16.mxu0 0
    %653 = vmatpush2.bf16.msra.mxu0 0
    %654 = vmatprep.mubr.bf16.mxu0 0
    %655 = vmatmul.mubr.bf16.gmra.mxu0 %v423
    %v656 = vpop.f32.mrf.mxu0
    %v657 = vadd.f32 0.0, %v656
    %v658 = vpop.f32.mrf.mxu0
    %v659 = vadd.f32 0.0, %v658
    %v660 = vpop.f32.mrf.mxu0
    %v661 = vpop.f32.mrf.mxu0
    %662 = vdwg.mxu0
    %663 = vmatprep.subr.bf16.mxu0 0
    %664 = vmatpush1.bf16.msra.mxu0 %v284
    %665 = vmatprep.subr.bf16.mxu0 0
    %666 = vmatpush1.bf16.msra.mxu0 %v281
    %667 = vmatprep.subr.bf16.mxu0 0
    %668 = vmatpush1.bf16.msra.mxu0 %v278
    %669 = vmatprep.subr.bf16.mxu0 0
    %670 = vmatpush1.bf16.msra.mxu0 %v275
    %671 = vmatprep.subr.bf16.mxu0 0
    %672 = vmatpush1.bf16.msra.mxu0 %v272
    %673 = vmatprep.subr.bf16.mxu0 0
    %674 = vmatpush1.bf16.msra.mxu0 %v269
    %675 = vmatprep.subr.bf16.mxu0 0
    %676 = vmatpush1.bf16.msra.mxu0 %v266
    %677 = vmatprep.subr.bf16.mxu0 0
    %678 = vmatpush1.bf16.msra.mxu0 %v263
    %679 = vmatprep.subr.bf16.mxu0 0
    %680 = vmatpush2.bf16.msra.mxu0 0
    %681 = vmatprep.subr.bf16.mxu0 0
    %682 = vmatpush2.bf16.msra.mxu0 0
    %683 = vmatprep.subr.bf16.mxu0 0
    %684 = vmatpush2.bf16.msra.mxu0 0
    %685 = vmatprep.subr.bf16.mxu0 0
    %686 = vmatpush2.bf16.msra.mxu0 0
    %687 = vmatprep.subr.bf16.mxu0 0
    %688 = vmatpush2.bf16.msra.mxu0 0
    %689 = vmatprep.subr.bf16.mxu0 0
    %690 = vmatpush2.bf16.msra.mxu0 0
    %691 = vmatprep.subr.bf16.mxu0 0
    %692 = vmatpush2.bf16.msra.mxu0 0
    %693 = vmatprep.subr.bf16.mxu0 0
    %694 = vmatpush2.bf16.msra.mxu0 0
    %695 = vmatprep.mubr.bf16.mxu0 0
    %696 = vmatmul.mubr.bf16.gmra.mxu0 %v423
    %v697 = vpop.f32.mrf.mxu0
    %v698 = vadd.f32 0.0, %v697
    %v699 = vpop.f32.mrf.mxu0
    %v700 = vpop.f32.mrf.mxu0
    %v701 = vpop.f32.mrf.mxu0
    %702 = vdwg.mxu0
    %v703 = vadd.f32 %v619, %v657
    %v704 = vadd.f32 %v620, %v659
    %v705 = vxor.u32 %v703, 2147483648
    %v706 = vxor.u32 %v704, 2147483648
    %v707 = vmul.f32 %v705, 1.442695
    %v708 = vpow.pop %v707
    %v709 = vmul.f32 %v706, 1.442695
    %v710 = vpow.pop %v709
    %v711 = vadd.f32 %v708, 1.0
    %v712 = vadd.f32 %v710, 1.0
    %v713 = vrcp.pop %v711
    %v714 = vmul.f32 1.0, %v713
    %v715 = vrcp.pop %v712
    %v716 = vmul.f32 1.0, %v715
    %v717 = vadd.f32 %v698, %v408
    %v718 = vmul.f32 %v714, %v717
    %v719 = vadd.f32 %v621, %v718
    %v720 = vtanh.pop %v719
    %v721 = vsub.f32 1.0, %v716
    %v722 = vmul.f32 %v721, %v720
    %v723 = vmul.f32 %v716, %v422
    %v724 = vadd.f32 %v722, %v723
    %p725 = scmp.lt.s32.totalorder %s615, 8
    %s726 = scalar_select %p725, 1, 0
    %v727 = vstv %s726
    %vm728 = vcmp.eq.s32.totalorder %v727, 1
    %v729 = vsel %vm728, %v724, %v422
    %v730 = vpack.c.bf16 %v729, %v729
    %731 = vmatprep.subr.bf16.mxu0 0
    %732 = vmatpush1.bf16.msra.mxu0 %v469
    %733 = vmatprep.subr.bf16.mxu0 0
    %734 = vmatpush1.bf16.msra.mxu0 %v468
    %735 = vmatprep.subr.bf16.mxu0 0
    %736 = vmatpush1.bf16.msra.mxu0 %v467
    %737 = vmatprep.subr.bf16.mxu0 0
    %738 = vmatpush1.bf16.msra.mxu0 %v466
    %739 = vmatprep.subr.bf16.mxu0 0
    %740 = vmatpush1.bf16.msra.mxu0 %v465
    %741 = vmatprep.subr.bf16.mxu0 0
    %742 = vmatpush1.bf16.msra.mxu0 %v464
    %743 = vmatprep.subr.bf16.mxu0 0
    %744 = vmatpush1.bf16.msra.mxu0 %v463
    %745 = vmatprep.subr.bf16.mxu0 0
    %746 = vmatpush1.bf16.msra.mxu0 %v462
    %747 = vmatprep.subr.bf16.mxu0 0
    %748 = vmatpush2.bf16.msra.mxu0 0
    %749 = vmatprep.subr.bf16.mxu0 0
    %750 = vmatpush2.bf16.msra.mxu0 0
    %751 = vmatprep.subr.bf16.mxu0 0
    %752 = vmatpush2.bf16.msra.mxu0 0
    %753 = vmatprep.subr.bf16.mxu0 0
    %754 = vmatpush2.bf16.msra.mxu0 0
    %755 = vmatprep.subr.bf16.mxu0 0
    %756 = vmatpush2.bf16.msra.mxu0 0
    %757 = vmatprep.subr.bf16.mxu0 0
    %758 = vmatpush2.bf16.msra.mxu0 0
    %759 = vmatprep.subr.bf16.mxu0 0
    %760 = vmatpush2.bf16.msra.mxu0 0
    %761 = vmatprep.subr.bf16.mxu0 0
    %762 = vmatpush2.bf16.msra.mxu0 0
    %763 = vmatprep.mubr.bf16.mxu0 0
    %764 = vmatmul.mubr.bf16.gmra.mxu0 %v730
    %v765 = vpop.f32.mrf.mxu0
    %v766 = vadd.f32 %v428, %v765
    %v767 = vpop.f32.mrf.mxu0
    %v768 = vpop.f32.mrf.mxu0
    %v769 = vpop.f32.mrf.mxu0
    %770 = vdwg.mxu0
    %v771 = vmax.f32 %v766, 0.0
    %v772 = vpack.c.bf16 %v771, %v771
    %773 = vmatprep.subr.bf16.mxu0 0
    %774 = vmatpush1.bf16.msra.mxu0 %v565
    %775 = vmatprep.subr.bf16.mxu0 0
    %776 = vmatpush1.bf16.msra.mxu0 %v564
    %777 = vmatprep.subr.bf16.mxu0 0
    %778 = vmatpush1.bf16.msra.mxu0 %v563
    %779 = vmatprep.subr.bf16.mxu0 0
    %780 = vmatpush1.bf16.msra.mxu0 %v562
    %781 = vmatprep.subr.bf16.mxu0 0
    %782 = vmatpush1.bf16.msra.mxu0 %v561
    %783 = vmatprep.subr.bf16.mxu0 0
    %784 = vmatpush1.bf16.msra.mxu0 %v560
    %785 = vmatprep.subr.bf16.mxu0 0
    %786 = vmatpush1.bf16.msra.mxu0 %v559
    %787 = vmatprep.subr.bf16.mxu0 0
    %788 = vmatpush1.bf16.msra.mxu0 %v558
    %789 = vmatprep.subr.bf16.mxu0 0
    %790 = vmatpush2.bf16.msra.mxu0 0
    %791 = vmatprep.subr.bf16.mxu0 0
    %792 = vmatpush2.bf16.msra.mxu0 0
    %793 = vmatprep.subr.bf16.mxu0 0
    %794 = vmatpush2.bf16.msra.mxu0 0
    %795 = vmatprep.subr.bf16.mxu0 0
    %796 = vmatpush2.bf16.msra.mxu0 0
    %797 = vmatprep.subr.bf16.mxu0 0
    %798 = vmatpush2.bf16.msra.mxu0 0
    %799 = vmatprep.subr.bf16.mxu0 0
    %800 = vmatpush2.bf16.msra.mxu0 0
    %801 = vmatprep.subr.bf16.mxu0 0
    %802 = vmatpush2.bf16.msra.mxu0 0
    %803 = vmatprep.subr.bf16.mxu0 0
    %804 = vmatpush2.bf16.msra.mxu0 0
    %805 = vmatprep.mubr.bf16.mxu0 0
    %806 = vmatmul.mubr.bf16.gmra.mxu0 %v772
    %v807 = vpop.f32.mrf.mxu0
    %v808 = vadd.f32 %v524, %v807
    %v809 = vpop.f32.mrf.mxu0
    %v810 = vpop.f32.mrf.mxu0
    %v811 = vpop.f32.mrf.mxu0
    %812 = vdwg.mxu0
    %s813 = scalar_lea.vmem [#allocation12], 8
    %814 = vst [vmem:[%s813] sm:$0xff] %v808
    %s815 = sadd.s32 %s174, 2
    %s816 = scalar_lea.vmem [#allocation3], 24
    %v817 = vld [vmem:[%s816] sm:$0xff]
    %v818 = vld [vmem:[%s816 + $0x8] sm:$0xf]
    %v819 = vunpack.c.l.bf16 %v817
    %v820 = vunpack.c.h.bf16 %v817
    %v821 = vunpack.c.l.bf16 %v818
    %822 = vmatprep.subr.bf16.mxu0 %v283
    %823 = vmatpush1.bf16.msra.mxu0 %v282
    %824 = vmatprep.subr.bf16.mxu0 %v280
    %825 = vmatpush1.bf16.msra.mxu0 %v279
    %826 = vmatprep.subr.bf16.mxu0 %v277
    %827 = vmatpush1.bf16.msra.mxu0 %v276
    %828 = vmatprep.subr.bf16.mxu0 %v274
    %829 = vmatpush1.bf16.msra.mxu0 %v273
    %830 = vmatprep.subr.bf16.mxu0 %v271
    %831 = vmatpush1.bf16.msra.mxu0 %v270
    %832 = vmatprep.subr.bf16.mxu0 %v268
    %833 = vmatpush1.bf16.msra.mxu0 %v267
    %834 = vmatprep.subr.bf16.mxu0 %v265
    %835 = vmatpush1.bf16.msra.mxu0 %v264
    %836 = vmatprep.subr.bf16.mxu0 %v262
    %837 = vmatpush1.bf16.msra.mxu0 %v261
    %838 = vmatprep.subr.bf16.mxu0 0
    %839 = vmatpush2.bf16.msra.mxu0 0
    %840 = vmatprep.subr.bf16.mxu0 0
    %841 = vmatpush2.bf16.msra.mxu0 0
    %842 = vmatprep.subr.bf16.mxu0 0
    %843 = vmatpush2.bf16.msra.mxu0 0
    %844 = vmatprep.subr.bf16.mxu0 0
    %845 = vmatpush2.bf16.msra.mxu0 0
    %846 = vmatprep.subr.bf16.mxu0 0
    %847 = vmatpush2.bf16.msra.mxu0 0
    %848 = vmatprep.subr.bf16.mxu0 0
    %849 = vmatpush2.bf16.msra.mxu0 0
    %850 = vmatprep.subr.bf16.mxu0 0
    %851 = vmatpush2.bf16.msra.mxu0 0
    %852 = vmatprep.subr.bf16.mxu0 0
    %853 = vmatpush2.bf16.msra.mxu0 0
    %854 = vmatprep.mubr.bf16.mxu0 0
    %855 = vmatmul.mubr.bf16.gmra.mxu0 %v730
    %v856 = vpop.f32.mrf.mxu0
    %v857 = vadd.f32 0.0, %v856
    %v858 = vpop.f32.mrf.mxu0
    %v859 = vadd.f32 0.0, %v858
    %v860 = vpop.f32.mrf.mxu0
    %v861 = vpop.f32.mrf.mxu0
    %862 = vdwg.mxu0
    %863 = vmatprep.subr.bf16.mxu0 0
    %864 = vmatpush1.bf16.msra.mxu0 %v284
    %865 = vmatprep.subr.bf16.mxu0 0
    %866 = vmatpush1.bf16.msra.mxu0 %v281
    %867 = vmatprep.subr.bf16.mxu0 0
    %868 = vmatpush1.bf16.msra.mxu0 %v278
    %869 = vmatprep.subr.bf16.mxu0 0
    %870 = vmatpush1.bf16.msra.mxu0 %v275
    %871 = vmatprep.subr.bf16.mxu0 0
    %872 = vmatpush1.bf16.msra.mxu0 %v272
    %873 = vmatprep.subr.bf16.mxu0 0
    %874 = vmatpush1.bf16.msra.mxu0 %v269
    %875 = vmatprep.subr.bf16.mxu0 0
    %876 = vmatpush1.bf16.msra.mxu0 %v266
    %877 = vmatprep.subr.bf16.mxu0 0
    %878 = vmatpush1.bf16.msra.mxu0 %v263
    %879 = vmatprep.subr.bf16.mxu0 0
    %880 = vmatpush2.bf16.msra.mxu0 0
    %881 = vmatprep.subr.bf16.mxu0 0
    %882 = vmatpush2.bf16.msra.mxu0 0
    %883 = vmatprep.subr.bf16.mxu0 0
    %884 = vmatpush2.bf16.msra.mxu0 0
    %885 = vmatprep.subr.bf16.mxu0 0
    %886 = vmatpush2.bf16.msra.mxu0 0
    %887 = vmatprep.subr.bf16.mxu0 0
    %888 = vmatpush2.bf16.msra.mxu0 0
    %889 = vmatprep.subr.bf16.mxu0 0
    %890 = vmatpush2.bf16.msra.mxu0 0
    %891 = vmatprep.subr.bf16.mxu0 0
    %892 = vmatpush2.bf16.msra.mxu0 0
    %893 = vmatprep.subr.bf16.mxu0 0
    %894 = vmatpush2.bf16.msra.mxu0 0
    %895 = vmatprep.mubr.bf16.mxu0 0
    %896 = vmatmul.mubr.bf16.gmra.mxu0 %v730
    %v897 = vpop.f32.mrf.mxu0
    %v898 = vadd.f32 0.0, %v897
    %v899 = vpop.f32.mrf.mxu0
    %v900 = vpop.f32.mrf.mxu0
    %v901 = vpop.f32.mrf.mxu0
    %902 = vdwg.mxu0
    %v903 = vadd.f32 %v819, %v857
    %v904 = vadd.f32 %v820, %v859
    %v905 = vxor.u32 %v903, 2147483648
    %v906 = vxor.u32 %v904, 2147483648
    %v907 = vmul.f32 %v905, 1.442695
    %v908 = vpow.pop %v907
    %v909 = vmul.f32 %v906, 1.442695
    %v910 = vpow.pop %v909
    %v911 = vadd.f32 %v908, 1.0
    %v912 = vadd.f32 %v910, 1.0
    %v913 = vrcp.pop %v911
    %v914 = vmul.f32 1.0, %v913
    %v915 = vrcp.pop %v912
    %v916 = vmul.f32 1.0, %v915
    %v917 = vadd.f32 %v898, %v408
    %v918 = vmul.f32 %v914, %v917
    %v919 = vadd.f32 %v821, %v918
    %v920 = vtanh.pop %v919
    %v921 = vsub.f32 1.0, %v916
    %v922 = vmul.f32 %v921, %v920
    %v923 = vmul.f32 %v916, %v729
    %v924 = vadd.f32 %v922, %v923
    %p925 = scmp.lt.s32.totalorder %s815, 8
    %s926 = scalar_select %p925, 1, 0
    %v927 = vstv %s926
    %vm928 = vcmp.eq.s32.totalorder %v927, 1
    %v929 = vsel %vm928, %v924, %v729
    %v930 = vpack.c.bf16 %v929, %v929
    %931 = vmatprep.subr.bf16.mxu0 0
    %932 = vmatpush1.bf16.msra.mxu0 %v469
    %933 = vmatprep.subr.bf16.mxu0 0
    %934 = vmatpush1.bf16.msra.mxu0 %v468
    %935 = vmatprep.subr.bf16.mxu0 0
    %936 = vmatpush1.bf16.msra.mxu0 %v467
    %937 = vmatprep.subr.bf16.mxu0 0
    %938 = vmatpush1.bf16.msra.mxu0 %v466
    %939 = vmatprep.subr.bf16.mxu0 0
    %940 = vmatpush1.bf16.msra.mxu0 %v465
    %941 = vmatprep.subr.bf16.mxu0 0
    %942 = vmatpush1.bf16.msra.mxu0 %v464
    %943 = vmatprep.subr.bf16.mxu0 0
    %944 = vmatpush1.bf16.msra.mxu0 %v463
    %945 = vmatprep.subr.bf16.mxu0 0
    %946 = vmatpush1.bf16.msra.mxu0 %v462
    %947 = vmatprep.subr.bf16.mxu0 0
    %948 = vmatpush2.bf16.msra.mxu0 0
    %949 = vmatprep.subr.bf16.mxu0 0
    %950 = vmatpush2.bf16.msra.mxu0 0
    %951 = vmatprep.subr.bf16.mxu0 0
    %952 = vmatpush2.bf16.msra.mxu0 0
    %953 = vmatprep.subr.bf16.mxu0 0
    %954 = vmatpush2.bf16.msra.mxu0 0
    %955 = vmatprep.subr.bf16.mxu0 0
    %956 = vmatpush2.bf16.msra.mxu0 0
    %957 = vmatprep.subr.bf16.mxu0 0
    %958 = vmatpush2.bf16.msra.mxu0 0
    %959 = vmatprep.subr.bf16.mxu0 0
    %960 = vmatpush2.bf16.msra.mxu0 0
    %961 = vmatprep.subr.bf16.mxu0 0
    %962 = vmatpush2.bf16.msra.mxu0 0
    %963 = vmatprep.mubr.bf16.mxu0 0
    %964 = vmatmul.mubr.bf16.gmra.mxu0 %v930
    %v965 = vpop.f32.mrf.mxu0
    %v966 = vadd.f32 %v428, %v965
    %v967 = vpop.f32.mrf.mxu0
    %v968 = vpop.f32.mrf.mxu0
    %v969 = vpop.f32.mrf.mxu0
    %970 = vdwg.mxu0
    %v971 = vmax.f32 %v966, 0.0
    %v972 = vpack.c.bf16 %v971, %v971
    %973 = vmatprep.subr.bf16.mxu0 0
    %974 = vmatpush1.bf16.msra.mxu0 %v565
    %975 = vmatprep.subr.bf16.mxu0 0
    %976 = vmatpush1.bf16.msra.mxu0 %v564
    %977 = vmatprep.subr.bf16.mxu0 0
    %978 = vmatpush1.bf16.msra.mxu0 %v563
    %979 = vmatprep.subr.bf16.mxu0 0
    %980 = vmatpush1.bf16.msra.mxu0 %v562
    %981 = vmatprep.subr.bf16.mxu0 0
    %982 = vmatpush1.bf16.msra.mxu0 %v561
    %983 = vmatprep.subr.bf16.mxu0 0
    %984 = vmatpush1.bf16.msra.mxu0 %v560
    %985 = vmatprep.subr.bf16.mxu0 0
    %986 = vmatpush1.bf16.msra.mxu0 %v559
    %987 = vmatprep.subr.bf16.mxu0 0
    %988 = vmatpush1.bf16.msra.mxu0 %v558
    %989 = vmatprep.subr.bf16.mxu0 0
    %990 = vmatpush2.bf16.msra.mxu0 0
    %991 = vmatprep.subr.bf16.mxu0 0
    %992 = vmatpush2.bf16.msra.mxu0 0
    %993 = vmatprep.subr.bf16.mxu0 0
    %994 = vmatpush2.bf16.msra.mxu0 0
    %995 = vmatprep.subr.bf16.mxu0 0
    %996 = vmatpush2.bf16.msra.mxu0 0
    %997 = vmatprep.subr.bf16.mxu0 0
    %998 = vmatpush2.bf16.msra.mxu0 0
    %999 = vmatprep.subr.bf16.mxu0 0
    %1000 = vmatpush2.bf16.msra.mxu0 0
    %1001 = vmatprep.subr.bf16.mxu0 0
    %1002 = vmatpush2.bf16.msra.mxu0 0
    %1003 = vmatprep.subr.bf16.mxu0 0
    %1004 = vmatpush2.bf16.msra.mxu0 0
    %1005 = vmatprep.mubr.bf16.mxu0 0
    %1006 = vmatmul.mubr.bf16.gmra.mxu0 %v972
    %v1007 = vpop.f32.mrf.mxu0
    %v1008 = vadd.f32 %v524, %v1007
    %v1009 = vpop.f32.mrf.mxu0
    %v1010 = vpop.f32.mrf.mxu0
    %v1011 = vpop.f32.mrf.mxu0
    %1012 = vdwg.mxu0
    %s1013 = scalar_lea.vmem [#allocation12], 16
    %1014 = vst [vmem:[%s1013] sm:$0xff] %v1008
    %s1015 = sadd.s32 %s174, 3
    %s1016 = scalar_lea.vmem [#allocation3], 36
    %v1017 = vld [vmem:[%s1016] sm:$0xff]
    %v1018 = vld [vmem:[%s1016 + $0x8] sm:$0xf]
    %v1019 = vunpack.c.l.bf16 %v1017
    %v1020 = vunpack.c.h.bf16 %v1017
    %v1021 = vunpack.c.l.bf16 %v1018
    %1022 = vmatprep.subr.bf16.mxu0 %v283
    %1023 = vmatpush1.bf16.msra.mxu0 %v282
    %1024 = vmatprep.subr.bf16.mxu0 %v280
    %1025 = vmatpush1.bf16.msra.mxu0 %v279
    %1026 = vmatprep.subr.bf16.mxu0 %v277
    %1027 = vmatpush1.bf16.msra.mxu0 %v276
    %1028 = vmatprep.subr.bf16.mxu0 %v274
    %1029 = vmatpush1.bf16.msra.mxu0 %v273
    %1030 = vmatprep.subr.bf16.mxu0 %v271
    %1031 = vmatpush1.bf16.msra.mxu0 %v270
    %1032 = vmatprep.subr.bf16.mxu0 %v268
    %1033 = vmatpush1.bf16.msra.mxu0 %v267
    %1034 = vmatprep.subr.bf16.mxu0 %v265
    %1035 = vmatpush1.bf16.msra.mxu0 %v264
    %1036 = vmatprep.subr.bf16.mxu0 %v262
    %1037 = vmatpush1.bf16.msra.mxu0 %v261
    %1038 = vmatprep.subr.bf16.mxu0 0
    %1039 = vmatpush2.bf16.msra.mxu0 0
    %1040 = vmatprep.subr.bf16.mxu0 0
    %1041 = vmatpush2.bf16.msra.mxu0 0
    %1042 = vmatprep.subr.bf16.mxu0 0
    %1043 = vmatpush2.bf16.msra.mxu0 0
    %1044 = vmatprep.subr.bf16.mxu0 0
    %1045 = vmatpush2.bf16.msra.mxu0 0
    %1046 = vmatprep.subr.bf16.mxu0 0
    %1047 = vmatpush2.bf16.msra.mxu0 0
    %1048 = vmatprep.subr.bf16.mxu0 0
    %1049 = vmatpush2.bf16.msra.mxu0 0
    %1050 = vmatprep.subr.bf16.mxu0 0
    %1051 = vmatpush2.bf16.msra.mxu0 0
    %1052 = vmatprep.subr.bf16.mxu0 0
    %1053 = vmatpush2.bf16.msra.mxu0 0
    %1054 = vmatprep.mubr.bf16.mxu0 0
    %1055 = vmatmul.mubr.bf16.gmra.mxu0 %v930
    %v1056 = vpop.f32.mrf.mxu0
    %v1057 = vadd.f32 0.0, %v1056
    %v1058 = vpop.f32.mrf.mxu0
    %v1059 = vadd.f32 0.0, %v1058
    %v1060 = vpop.f32.mrf.mxu0
    %v1061 = vpop.f32.mrf.mxu0
    %1062 = vdwg.mxu0
    %1063 = vmatprep.subr.bf16.mxu0 0
    %1064 = vmatpush1.bf16.msra.mxu0 %v284
    %1065 = vmatprep.subr.bf16.mxu0 0
    %1066 = vmatpush1.bf16.msra.mxu0 %v281
    %1067 = vmatprep.subr.bf16.mxu0 0
    %1068 = vmatpush1.bf16.msra.mxu0 %v278
    %1069 = vmatprep.subr.bf16.mxu0 0
    %1070 = vmatpush1.bf16.msra.mxu0 %v275
    %1071 = vmatprep.subr.bf16.mxu0 0
    %1072 = vmatpush1.bf16.msra.mxu0 %v272
    %1073 = vmatprep.subr.bf16.mxu0 0
    %1074 = vmatpush1.bf16.msra.mxu0 %v269
    %1075 = vmatprep.subr.bf16.mxu0 0
    %1076 = vmatpush1.bf16.msra.mxu0 %v266
    %1077 = vmatprep.subr.bf16.mxu0 0
    %1078 = vmatpush1.bf16.msra.mxu0 %v263
    %1079 = vmatprep.subr.bf16.mxu0 0
    %1080 = vmatpush2.bf16.msra.mxu0 0
    %1081 = vmatprep.subr.bf16.mxu0 0
    %1082 = vmatpush2.bf16.msra.mxu0 0
    %1083 = vmatprep.subr.bf16.mxu0 0
    %1084 = vmatpush2.bf16.msra.mxu0 0
    %1085 = vmatprep.subr.bf16.mxu0 0
    %1086 = vmatpush2.bf16.msra.mxu0 0
    %1087 = vmatprep.subr.bf16.mxu0 0
    %1088 = vmatpush2.bf16.msra.mxu0 0
    %1089 = vmatprep.subr.bf16.mxu0 0
    %1090 = vmatpush2.bf16.msra.mxu0 0
    %1091 = vmatprep.subr.bf16.mxu0 0
    %1092 = vmatpush2.bf16.msra.mxu0 0
    %1093 = vmatprep.subr.bf16.mxu0 0
    %1094 = vmatpush2.bf16.msra.mxu0 0
    %1095 = vmatprep.mubr.bf16.mxu0 0
    %1096 = vmatmul.mubr.bf16.gmra.mxu0 %v930
    %v1097 = vpop.f32.mrf.mxu0
    %v1098 = vadd.f32 0.0, %v1097
    %v1099 = vpop.f32.mrf.mxu0
    %v1100 = vpop.f32.mrf.mxu0
    %v1101 = vpop.f32.mrf.mxu0
    %1102 = vdwg.mxu0
    %v1103 = vadd.f32 %v1019, %v1057
    %v1104 = vadd.f32 %v1020, %v1059
    %v1105 = vxor.u32 %v1103, 2147483648
    %v1106 = vxor.u32 %v1104, 2147483648
    %v1107 = vmul.f32 %v1105, 1.442695
    %v1108 = vpow.pop %v1107
    %v1109 = vmul.f32 %v1106, 1.442695
    %v1110 = vpow.pop %v1109
    %v1111 = vadd.f32 %v1108, 1.0
    %v1112 = vadd.f32 %v1110, 1.0
    %v1113 = vrcp.pop %v1111
    %v1114 = vmul.f32 1.0, %v1113
    %v1115 = vrcp.pop %v1112
    %v1116 = vmul.f32 1.0, %v1115
    %v1117 = vadd.f32 %v1098, %v408
    %v1118 = vmul.f32 %v1114, %v1117
    %v1119 = vadd.f32 %v1021, %v1118
    %v1120 = vtanh.pop %v1119
    %v1121 = vsub.f32 1.0, %v1116
    %v1122 = vmul.f32 %v1121, %v1120
    %v1123 = vmul.f32 %v1116, %v929
    %v1124 = vadd.f32 %v1122, %v1123
    %p1125 = scmp.lt.s32.totalorder %s1015, 8
    %s1126 = scalar_select %p1125, 1, 0
    %v1127 = vstv %s1126
    %vm1128 = vcmp.eq.s32.totalorder %v1127, 1
    %v1129 = vsel %vm1128, %v1124, %v929
    %v1130 = vpack.c.bf16 %v1129, %v1129
    %1131 = vmatprep.subr.bf16.mxu0 0
    %1132 = vmatpush1.bf16.msra.mxu0 %v469
    %1133 = vmatprep.subr.bf16.mxu0 0
    %1134 = vmatpush1.bf16.msra.mxu0 %v468
    %1135 = vmatprep.subr.bf16.mxu0 0
    %1136 = vmatpush1.bf16.msra.mxu0 %v467
    %1137 = vmatprep.subr.bf16.mxu0 0
    %1138 = vmatpush1.bf16.msra.mxu0 %v466
    %1139 = vmatprep.subr.bf16.mxu0 0
    %1140 = vmatpush1.bf16.msra.mxu0 %v465
    %1141 = vmatprep.subr.bf16.mxu0 0
    %1142 = vmatpush1.bf16.msra.mxu0 %v464
    %1143 = vmatprep.subr.bf16.mxu0 0
    %1144 = vmatpush1.bf16.msra.mxu0 %v463
    %1145 = vmatprep.subr.bf16.mxu0 0
    %1146 = vmatpush1.bf16.msra.mxu0 %v462
    %1147 = vmatprep.subr.bf16.mxu0 0
    %1148 = vmatpush2.bf16.msra.mxu0 0
    %1149 = vmatprep.subr.bf16.mxu0 0
    %1150 = vmatpush2.bf16.msra.mxu0 0
    %1151 = vmatprep.subr.bf16.mxu0 0
    %1152 = vmatpush2.bf16.msra.mxu0 0
    %1153 = vmatprep.subr.bf16.mxu0 0
    %1154 = vmatpush2.bf16.msra.mxu0 0
    %1155 = vmatprep.subr.bf16.mxu0 0
    %1156 = vmatpush2.bf16.msra.mxu0 0
    %1157 = vmatprep.subr.bf16.mxu0 0
    %1158 = vmatpush2.bf16.msra.mxu0 0
    %1159 = vmatprep.subr.bf16.mxu0 0
    %1160 = vmatpush2.bf16.msra.mxu0 0
    %1161 = vmatprep.subr.bf16.mxu0 0
    %1162 = vmatpush2.bf16.msra.mxu0 0
    %1163 = vmatprep.mubr.bf16.mxu0 0
    %1164 = vmatmul.mubr.bf16.gmra.mxu0 %v1130
    %v1165 = vpop.f32.mrf.mxu0
    %v1166 = vadd.f32 %v428, %v1165
    %v1167 = vpop.f32.mrf.mxu0
    %v1168 = vpop.f32.mrf.mxu0
    %v1169 = vpop.f32.mrf.mxu0
    %1170 = vdwg.mxu0
    %v1171 = vmax.f32 %v1166, 0.0
    %v1172 = vpack.c.bf16 %v1171, %v1171
    %1173 = vmatprep.subr.bf16.mxu0 0
    %1174 = vmatpush1.bf16.msra.mxu0 %v565
    %1175 = vmatprep.subr.bf16.mxu0 0
    %1176 = vmatpush1.bf16.msra.mxu0 %v564
    %1177 = vmatprep.subr.bf16.mxu0 0
    %1178 = vmatpush1.bf16.msra.mxu0 %v563
    %1179 = vmatprep.subr.bf16.mxu0 0
    %1180 = vmatpush1.bf16.msra.mxu0 %v562
    %1181 = vmatprep.subr.bf16.mxu0 0
    %1182 = vmatpush1.bf16.msra.mxu0 %v561
    %1183 = vmatprep.subr.bf16.mxu0 0
    %1184 = vmatpush1.bf16.msra.mxu0 %v560
    %1185 = vmatprep.subr.bf16.mxu0 0
    %1186 = vmatpush1.bf16.msra.mxu0 %v559
    %1187 = vmatprep.subr.bf16.mxu0 0
    %1188 = vmatpush1.bf16.msra.mxu0 %v558
    %1189 = vmatprep.subr.bf16.mxu0 0
    %1190 = vmatpush2.bf16.msra.mxu0 0
    %1191 = vmatprep.subr.bf16.mxu0 0
    %1192 = vmatpush2.bf16.msra.mxu0 0
    %1193 = vmatprep.subr.bf16.mxu0 0
    %1194 = vmatpush2.bf16.msra.mxu0 0
    %1195 = vmatprep.subr.bf16.mxu0 0
    %1196 = vmatpush2.bf16.msra.mxu0 0
    %1197 = vmatprep.subr.bf16.mxu0 0
    %1198 = vmatpush2.bf16.msra.mxu0 0
    %1199 = vmatprep.subr.bf16.mxu0 0
    %1200 = vmatpush2.bf16.msra.mxu0 0
    %1201 = vmatprep.subr.bf16.mxu0 0
    %1202 = vmatpush2.bf16.msra.mxu0 0
    %1203 = vmatprep.subr.bf16.mxu0 0
    %1204 = vmatpush2.bf16.msra.mxu0 0
    %1205 = vmatprep.mubr.bf16.mxu0 0
    %1206 = vmatmul.mubr.bf16.gmra.mxu0 %v1172
    %v1207 = vpop.f32.mrf.mxu0
    %v1208 = vadd.f32 %v524, %v1207
    %v1209 = vpop.f32.mrf.mxu0
    %v1210 = vpop.f32.mrf.mxu0
    %v1211 = vpop.f32.mrf.mxu0
    %1212 = vdwg.mxu0
    %s1213 = scalar_lea.vmem [#allocation12], 24
    %1214 = vst [vmem:[%s1213] sm:$0xff] %v1208
    %s1215 = sadd.s32 %s174, 4
    %s1216 = scalar_lea.vmem [#allocation3], 48
    %v1217 = vld [vmem:[%s1216] sm:$0xff]
    %v1218 = vld [vmem:[%s1216 + $0x8] sm:$0xf]
    %v1219 = vunpack.c.l.bf16 %v1217
    %v1220 = vunpack.c.h.bf16 %v1217
    %v1221 = vunpack.c.l.bf16 %v1218
    %1222 = vmatprep.subr.bf16.mxu0 %v283
    %1223 = vmatpush1.bf16.msra.mxu0 %v282
    %1224 = vmatprep.subr.bf16.mxu0 %v280
    %1225 = vmatpush1.bf16.msra.mxu0 %v279
    %1226 = vmatprep.subr.bf16.mxu0 %v277
    %1227 = vmatpush1.bf16.msra.mxu0 %v276
    %1228 = vmatprep.subr.bf16.mxu0 %v274
    %1229 = vmatpush1.bf16.msra.mxu0 %v273
    %1230 = vmatprep.subr.bf16.mxu0 %v271
    %1231 = vmatpush1.bf16.msra.mxu0 %v270
    %1232 = vmatprep.subr.bf16.mxu0 %v268
    %1233 = vmatpush1.bf16.msra.mxu0 %v267
    %1234 = vmatprep.subr.bf16.mxu0 %v265
    %1235 = vmatpush1.bf16.msra.mxu0 %v264
    %1236 = vmatprep.subr.bf16.mxu0 %v262
    %1237 = vmatpush1.bf16.msra.mxu0 %v261
    %1238 = vmatprep.subr.bf16.mxu0 0
    %1239 = vmatpush2.bf16.msra.mxu0 0
    %1240 = vmatprep.subr.bf16.mxu0 0
    %1241 = vmatpush2.bf16.msra.mxu0 0
    %1242 = vmatprep.subr.bf16.mxu0 0
    %1243 = vmatpush2.bf16.msra.mxu0 0
    %1244 = vmatprep.subr.bf16.mxu0 0
    %1245 = vmatpush2.bf16.msra.mxu0 0
    %1246 = vmatprep.subr.bf16.mxu0 0
    %1247 = vmatpush2.bf16.msra.mxu0 0
    %1248 = vmatprep.subr.bf16.mxu0 0
    %1249 = vmatpush2.bf16.msra.mxu0 0
    %1250 = vmatprep.subr.bf16.mxu0 0
    %1251 = vmatpush2.bf16.msra.mxu0 0
    %1252 = vmatprep.subr.bf16.mxu0 0
    %1253 = vmatpush2.bf16.msra.mxu0 0
    %1254 = vmatprep.mubr.bf16.mxu0 0
    %1255 = vmatmul.mubr.bf16.gmra.mxu0 %v1130
    %v1256 = vpop.f32.mrf.mxu0
    %v1257 = vadd.f32 0.0, %v1256
    %v1258 = vpop.f32.mrf.mxu0
    %v1259 = vadd.f32 0.0, %v1258
    %v1260 = vpop.f32.mrf.mxu0
    %v1261 = vpop.f32.mrf.mxu0
    %1262 = vdwg.mxu0
    %1263 = vmatprep.subr.bf16.mxu0 0
    %1264 = vmatpush1.bf16.msra.mxu0 %v284
    %1265 = vmatprep.subr.bf16.mxu0 0
    %1266 = vmatpush1.bf16.msra.mxu0 %v281
    %1267 = vmatprep.subr.bf16.mxu0 0
    %1268 = vmatpush1.bf16.msra.mxu0 %v278
    %1269 = vmatprep.subr.bf16.mxu0 0
    %1270 = vmatpush1.bf16.msra.mxu0 %v275
    %1271 = vmatprep.subr.bf16.mxu0 0
    %1272 = vmatpush1.bf16.msra.mxu0 %v272
    %1273 = vmatprep.subr.bf16.mxu0 0
    %1274 = vmatpush1.bf16.msra.mxu0 %v269
    %1275 = vmatprep.subr.bf16.mxu0 0
    %1276 = vmatpush1.bf16.msra.mxu0 %v266
    %1277 = vmatprep.subr.bf16.mxu0 0
    %1278 = vmatpush1.bf16.msra.mxu0 %v263
    %1279 = vmatprep.subr.bf16.mxu0 0
    %1280 = vmatpush2.bf16.msra.mxu0 0
    %1281 = vmatprep.subr.bf16.mxu0 0
    %1282 = vmatpush2.bf16.msra.mxu0 0
    %1283 = vmatprep.subr.bf16.mxu0 0
    %1284 = vmatpush2.bf16.msra.mxu0 0
    %1285 = vmatprep.subr.bf16.mxu0 0
    %1286 = vmatpush2.bf16.msra.mxu0 0
    %1287 = vmatprep.subr.bf16.mxu0 0
    %1288 = vmatpush2.bf16.msra.mxu0 0
    %1289 = vmatprep.subr.bf16.mxu0 0
    %1290 = vmatpush2.bf16.msra.mxu0 0
    %1291 = vmatprep.subr.bf16.mxu0 0
    %1292 = vmatpush2.bf16.msra.mxu0 0
    %1293 = vmatprep.subr.bf16.mxu0 0
    %1294 = vmatpush2.bf16.msra.mxu0 0
    %1295 = vmatprep.mubr.bf16.mxu0 0
    %1296 = vmatmul.mubr.bf16.gmra.mxu0 %v1130
    %v1297 = vpop.f32.mrf.mxu0
    %v1298 = vadd.f32 0.0, %v1297
    %v1299 = vpop.f32.mrf.mxu0
    %v1300 = vpop.f32.mrf.mxu0
    %v1301 = vpop.f32.mrf.mxu0
    %1302 = vdwg.mxu0
    %v1303 = vadd.f32 %v1219, %v1257
    %v1304 = vadd.f32 %v1220, %v1259
    %v1305 = vxor.u32 %v1303, 2147483648
    %v1306 = vxor.u32 %v1304, 2147483648
    %v1307 = vmul.f32 %v1305, 1.442695
    %v1308 = vpow.pop %v1307
    %v1309 = vmul.f32 %v1306, 1.442695
    %v1310 = vpow.pop %v1309
    %v1311 = vadd.f32 %v1308, 1.0
    %v1312 = vadd.f32 %v1310, 1.0
    %v1313 = vrcp.pop %v1311
    %v1314 = vmul.f32 1.0, %v1313
    %v1315 = vrcp.pop %v1312
    %v1316 = vmul.f32 1.0, %v1315
    %v1317 = vadd.f32 %v1298, %v408
    %v1318 = vmul.f32 %v1314, %v1317
    %v1319 = vadd.f32 %v1221, %v1318
    %v1320 = vtanh.pop %v1319
    %v1321 = vsub.f32 1.0, %v1316
    %v1322 = vmul.f32 %v1321, %v1320
    %v1323 = vmul.f32 %v1316, %v1129
    %v1324 = vadd.f32 %v1322, %v1323
    %p1325 = scmp.lt.s32.totalorder %s1215, 8
    %s1326 = scalar_select %p1325, 1, 0
    %v1327 = vstv %s1326
    %vm1328 = vcmp.eq.s32.totalorder %v1327, 1
    %v1329 = vsel %vm1328, %v1324, %v1129
    %v1330 = vpack.c.bf16 %v1329, %v1329
    %1331 = vmatprep.subr.bf16.mxu0 0
    %1332 = vmatpush1.bf16.msra.mxu0 %v469
    %1333 = vmatprep.subr.bf16.mxu0 0
    %1334 = vmatpush1.bf16.msra.mxu0 %v468
    %1335 = vmatprep.subr.bf16.mxu0 0
    %1336 = vmatpush1.bf16.msra.mxu0 %v467
    %1337 = vmatprep.subr.bf16.mxu0 0
    %1338 = vmatpush1.bf16.msra.mxu0 %v466
    %1339 = vmatprep.subr.bf16.mxu0 0
    %1340 = vmatpush1.bf16.msra.mxu0 %v465
    %1341 = vmatprep.subr.bf16.mxu0 0
    %1342 = vmatpush1.bf16.msra.mxu0 %v464
    %1343 = vmatprep.subr.bf16.mxu0 0
    %1344 = vmatpush1.bf16.msra.mxu0 %v463
    %1345 = vmatprep.subr.bf16.mxu0 0
    %1346 = vmatpush1.bf16.msra.mxu0 %v462
    %1347 = vmatprep.subr.bf16.mxu0 0
    %1348 = vmatpush2.bf16.msra.mxu0 0
    %1349 = vmatprep.subr.bf16.mxu0 0
    %1350 = vmatpush2.bf16.msra.mxu0 0
    %1351 = vmatprep.subr.bf16.mxu0 0
    %1352 = vmatpush2.bf16.msra.mxu0 0
    %1353 = vmatprep.subr.bf16.mxu0 0
    %1354 = vmatpush2.bf16.msra.mxu0 0
    %1355 = vmatprep.subr.bf16.mxu0 0
    %1356 = vmatpush2.bf16.msra.mxu0 0
    %1357 = vmatprep.subr.bf16.mxu0 0
    %1358 = vmatpush2.bf16.msra.mxu0 0
    %1359 = vmatprep.subr.bf16.mxu0 0
    %1360 = vmatpush2.bf16.msra.mxu0 0
    %1361 = vmatprep.subr.bf16.mxu0 0
    %1362 = vmatpush2.bf16.msra.mxu0 0
    %1363 = vmatprep.mubr.bf16.mxu0 0
    %1364 = vmatmul.mubr.bf16.gmra.mxu0 %v1330
    %v1365 = vpop.f32.mrf.mxu0
    %v1366 = vadd.f32 %v428, %v1365
    %v1367 = vpop.f32.mrf.mxu0
    %v1368 = vpop.f32.mrf.mxu0
    %v1369 = vpop.f32.mrf.mxu0
    %1370 = vdwg.mxu0
    %v1371 = vmax.f32 %v1366, 0.0
    %v1372 = vpack.c.bf16 %v1371, %v1371
    %1373 = vmatprep.subr.bf16.mxu0 0
    %1374 = vmatpush1.bf16.msra.mxu0 %v565
    %1375 = vmatprep.subr.bf16.mxu0 0
    %1376 = vmatpush1.bf16.msra.mxu0 %v564
    %1377 = vmatprep.subr.bf16.mxu0 0
    %1378 = vmatpush1.bf16.msra.mxu0 %v563
    %1379 = vmatprep.subr.bf16.mxu0 0
    %1380 = vmatpush1.bf16.msra.mxu0 %v562
    %1381 = vmatprep.subr.bf16.mxu0 0
    %1382 = vmatpush1.bf16.msra.mxu0 %v561
    %1383 = vmatprep.subr.bf16.mxu0 0
    %1384 = vmatpush1.bf16.msra.mxu0 %v560
    %1385 = vmatprep.subr.bf16.mxu0 0
    %1386 = vmatpush1.bf16.msra.mxu0 %v559
    %1387 = vmatprep.subr.bf16.mxu0 0
    %1388 = vmatpush1.bf16.msra.mxu0 %v558
    %1389 = vmatprep.subr.bf16.mxu0 0
    %1390 = vmatpush2.bf16.msra.mxu0 0
    %1391 = vmatprep.subr.bf16.mxu0 0
    %1392 = vmatpush2.bf16.msra.mxu0 0
    %1393 = vmatprep.subr.bf16.mxu0 0
    %1394 = vmatpush2.bf16.msra.mxu0 0
    %1395 = vmatprep.subr.bf16.mxu0 0
    %1396 = vmatpush2.bf16.msra.mxu0 0
    %1397 = vmatprep.subr.bf16.mxu0 0
    %1398 = vmatpush2.bf16.msra.mxu0 0
    %1399 = vmatprep.subr.bf16.mxu0 0
    %1400 = vmatpush2.bf16.msra.mxu0 0
    %1401 = vmatprep.subr.bf16.mxu0 0
    %1402 = vmatpush2.bf16.msra.mxu0 0
    %1403 = vmatprep.subr.bf16.mxu0 0
    %1404 = vmatpush2.bf16.msra.mxu0 0
    %1405 = vmatprep.mubr.bf16.mxu0 0
    %1406 = vmatmul.mubr.bf16.gmra.mxu0 %v1372
    %v1407 = vpop.f32.mrf.mxu0
    %v1408 = vadd.f32 %v524, %v1407
    %v1409 = vpop.f32.mrf.mxu0
    %v1410 = vpop.f32.mrf.mxu0
    %v1411 = vpop.f32.mrf.mxu0
    %1412 = vdwg.mxu0
    %s1413 = scalar_lea.vmem [#allocation12], 32
    %1414 = vst [vmem:[%s1413] sm:$0xff] %v1408
    %s1415 = sadd.s32 %s174, 5
    %s1416 = scalar_lea.vmem [#allocation3], 60
    %v1417 = vld [vmem:[%s1416] sm:$0xff]
    %v1418 = vld [vmem:[%s1416 + $0x8] sm:$0xf]
    %v1419 = vunpack.c.l.bf16 %v1417
    %v1420 = vunpack.c.h.bf16 %v1417
    %v1421 = vunpack.c.l.bf16 %v1418
    %1422 = vmatprep.subr.bf16.mxu0 %v283
    %1423 = vmatpush1.bf16.msra.mxu0 %v282
    %1424 = vmatprep.subr.bf16.mxu0 %v280
    %1425 = vmatpush1.bf16.msra.mxu0 %v279
    %1426 = vmatprep.subr.bf16.mxu0 %v277
    %1427 = vmatpush1.bf16.msra.mxu0 %v276
    %1428 = vmatprep.subr.bf16.mxu0 %v274
    %1429 = vmatpush1.bf16.msra.mxu0 %v273
    %1430 = vmatprep.subr.bf16.mxu0 %v271
    %1431 = vmatpush1.bf16.msra.mxu0 %v270
    %1432 = vmatprep.subr.bf16.mxu0 %v268
    %1433 = vmatpush1.bf16.msra.mxu0 %v267
    %1434 = vmatprep.subr.bf16.mxu0 %v265
    %1435 = vmatpush1.bf16.msra.mxu0 %v264
    %1436 = vmatprep.subr.bf16.mxu0 %v262
    %1437 = vmatpush1.bf16.msra.mxu0 %v261
    %1438 = vmatprep.subr.bf16.mxu0 0
    %1439 = vmatpush2.bf16.msra.mxu0 0
    %1440 = vmatprep.subr.bf16.mxu0 0
    %1441 = vmatpush2.bf16.msra.mxu0 0
    %1442 = vmatprep.subr.bf16.mxu0 0
    %1443 = vmatpush2.bf16.msra.mxu0 0
    %1444 = vmatprep.subr.bf16.mxu0 0
    %1445 = vmatpush2.bf16.msra.mxu0 0
    %1446 = vmatprep.subr.bf16.mxu0 0
    %1447 = vmatpush2.bf16.msra.mxu0 0
    %1448 = vmatprep.subr.bf16.mxu0 0
    %1449 = vmatpush2.bf16.msra.mxu0 0
    %1450 = vmatprep.subr.bf16.mxu0 0
    %1451 = vmatpush2.bf16.msra.mxu0 0
    %1452 = vmatprep.subr.bf16.mxu0 0
    %1453 = vmatpush2.bf16.msra.mxu0 0
    %1454 = vmatprep.mubr.bf16.mxu0 0
    %1455 = vmatmul.mubr.bf16.gmra.mxu0 %v1330
    %v1456 = vpop.f32.mrf.mxu0
    %v1457 = vadd.f32 0.0, %v1456
    %v1458 = vpop.f32.mrf.mxu0
    %v1459 = vadd.f32 0.0, %v1458
    %v1460 = vpop.f32.mrf.mxu0
    %v1461 = vpop.f32.mrf.mxu0
    %1462 = vdwg.mxu0
    %1463 = vmatprep.subr.bf16.mxu0 0
    %1464 = vmatpush1.bf16.msra.mxu0 %v284
    %1465 = vmatprep.subr.bf16.mxu0 0
    %1466 = vmatpush1.bf16.msra.mxu0 %v281
    %1467 = vmatprep.subr.bf16.mxu0 0
    %1468 = vmatpush1.bf16.msra.mxu0 %v278
    %1469 = vmatprep.subr.bf16.mxu0 0
    %1470 = vmatpush1.bf16.msra.mxu0 %v275
    %1471 = vmatprep.subr.bf16.mxu0 0
    %1472 = vmatpush1.bf16.msra.mxu0 %v272
    %1473 = vmatprep.subr.bf16.mxu0 0
    %1474 = vmatpush1.bf16.msra.mxu0 %v269
    %1475 = vmatprep.subr.bf16.mxu0 0
    %1476 = vmatpush1.bf16.msra.mxu0 %v266
    %1477 = vmatprep.subr.bf16.mxu0 0
    %1478 = vmatpush1.bf16.msra.mxu0 %v263
    %1479 = vmatprep.subr.bf16.mxu0 0
    %1480 = vmatpush2.bf16.msra.mxu0 0
    %1481 = vmatprep.subr.bf16.mxu0 0
    %1482 = vmatpush2.bf16.msra.mxu0 0
    %1483 = vmatprep.subr.bf16.mxu0 0
    %1484 = vmatpush2.bf16.msra.mxu0 0
    %1485 = vmatprep.subr.bf16.mxu0 0
    %1486 = vmatpush2.bf16.msra.mxu0 0
    %1487 = vmatprep.subr.bf16.mxu0 0
    %1488 = vmatpush2.bf16.msra.mxu0 0
    %1489 = vmatprep.subr.bf16.mxu0 0
    %1490 = vmatpush2.bf16.msra.mxu0 0
    %1491 = vmatprep.subr.bf16.mxu0 0
    %1492 = vmatpush2.bf16.msra.mxu0 0
    %1493 = vmatprep.subr.bf16.mxu0 0
    %1494 = vmatpush2.bf16.msra.mxu0 0
    %1495 = vmatprep.mubr.bf16.mxu0 0
    %1496 = vmatmul.mubr.bf16.gmra.mxu0 %v1330
    %v1497 = vpop.f32.mrf.mxu0
    %v1498 = vadd.f32 0.0, %v1497
    %v1499 = vpop.f32.mrf.mxu0
    %v1500 = vpop.f32.mrf.mxu0
    %v1501 = vpop.f32.mrf.mxu0
    %1502 = vdwg.mxu0
    %v1503 = vadd.f32 %v1419, %v1457
    %v1504 = vadd.f32 %v1420, %v1459
    %v1505 = vxor.u32 %v1503, 2147483648
    %v1506 = vxor.u32 %v1504, 2147483648
    %v1507 = vmul.f32 %v1505, 1.442695
    %v1508 = vpow.pop %v1507
    %v1509 = vmul.f32 %v1506, 1.442695
    %v1510 = vpow.pop %v1509
    %v1511 = vadd.f32 %v1508, 1.0
    %v1512 = vadd.f32 %v1510, 1.0
    %v1513 = vrcp.pop %v1511
    %v1514 = vmul.f32 1.0, %v1513
    %v1515 = vrcp.pop %v1512
    %v1516 = vmul.f32 1.0, %v1515
    %v1517 = vadd.f32 %v1498, %v408
    %v1518 = vmul.f32 %v1514, %v1517
    %v1519 = vadd.f32 %v1421, %v1518
    %v1520 = vtanh.pop %v1519
    %v1521 = vsub.f32 1.0, %v1516
    %v1522 = vmul.f32 %v1521, %v1520
    %v1523 = vmul.f32 %v1516, %v1329
    %v1524 = vadd.f32 %v1522, %v1523
    %p1525 = scmp.lt.s32.totalorder %s1415, 8
    %s1526 = scalar_select %p1525, 1, 0
    %v1527 = vstv %s1526
    %vm1528 = vcmp.eq.s32.totalorder %v1527, 1
    %v1529 = vsel %vm1528, %v1524, %v1329
    %v1530 = vpack.c.bf16 %v1529, %v1529
    %1531 = vmatprep.subr.bf16.mxu0 0
    %1532 = vmatpush1.bf16.msra.mxu0 %v469
    %1533 = vmatprep.subr.bf16.mxu0 0
    %1534 = vmatpush1.bf16.msra.mxu0 %v468
    %1535 = vmatprep.subr.bf16.mxu0 0
    %1536 = vmatpush1.bf16.msra.mxu0 %v467
    %1537 = vmatprep.subr.bf16.mxu0 0
    %1538 = vmatpush1.bf16.msra.mxu0 %v466
    %1539 = vmatprep.subr.bf16.mxu0 0
    %1540 = vmatpush1.bf16.msra.mxu0 %v465
    %1541 = vmatprep.subr.bf16.mxu0 0
    %1542 = vmatpush1.bf16.msra.mxu0 %v464
    %1543 = vmatprep.subr.bf16.mxu0 0
    %1544 = vmatpush1.bf16.msra.mxu0 %v463
    %1545 = vmatprep.subr.bf16.mxu0 0
    %1546 = vmatpush1.bf16.msra.mxu0 %v462
    %1547 = vmatprep.subr.bf16.mxu0 0
    %1548 = vmatpush2.bf16.msra.mxu0 0
    %1549 = vmatprep.subr.bf16.mxu0 0
    %1550 = vmatpush2.bf16.msra.mxu0 0
    %1551 = vmatprep.subr.bf16.mxu0 0
    %1552 = vmatpush2.bf16.msra.mxu0 0
    %1553 = vmatprep.subr.bf16.mxu0 0
    %1554 = vmatpush2.bf16.msra.mxu0 0
    %1555 = vmatprep.subr.bf16.mxu0 0
    %1556 = vmatpush2.bf16.msra.mxu0 0
    %1557 = vmatprep.subr.bf16.mxu0 0
    %1558 = vmatpush2.bf16.msra.mxu0 0
    %1559 = vmatprep.subr.bf16.mxu0 0
    %1560 = vmatpush2.bf16.msra.mxu0 0
    %1561 = vmatprep.subr.bf16.mxu0 0
    %1562 = vmatpush2.bf16.msra.mxu0 0
    %1563 = vmatprep.mubr.bf16.mxu0 0
    %1564 = vmatmul.mubr.bf16.gmra.mxu0 %v1530
    %v1565 = vpop.f32.mrf.mxu0
    %v1566 = vadd.f32 %v428, %v1565
    %v1567 = vpop.f32.mrf.mxu0
    %v1568 = vpop.f32.mrf.mxu0
    %v1569 = vpop.f32.mrf.mxu0
    %1570 = vdwg.mxu0
    %v1571 = vmax.f32 %v1566, 0.0
    %v1572 = vpack.c.bf16 %v1571, %v1571
    %1573 = vmatprep.subr.bf16.mxu0 0
    %1574 = vmatpush1.bf16.msra.mxu0 %v565
    %1575 = vmatprep.subr.bf16.mxu0 0
    %1576 = vmatpush1.bf16.msra.mxu0 %v564
    %1577 = vmatprep.subr.bf16.mxu0 0
    %1578 = vmatpush1.bf16.msra.mxu0 %v563
    %1579 = vmatprep.subr.bf16.mxu0 0
    %1580 = vmatpush1.bf16.msra.mxu0 %v562
    %1581 = vmatprep.subr.bf16.mxu0 0
    %1582 = vmatpush1.bf16.msra.mxu0 %v561
    %1583 = vmatprep.subr.bf16.mxu0 0
    %1584 = vmatpush1.bf16.msra.mxu0 %v560
    %1585 = vmatprep.subr.bf16.mxu0 0
    %1586 = vmatpush1.bf16.msra.mxu0 %v559
    %1587 = vmatprep.subr.bf16.mxu0 0
    %1588 = vmatpush1.bf16.msra.mxu0 %v558
    %1589 = vmatprep.subr.bf16.mxu0 0
    %1590 = vmatpush2.bf16.msra.mxu0 0
    %1591 = vmatprep.subr.bf16.mxu0 0
    %1592 = vmatpush2.bf16.msra.mxu0 0
    %1593 = vmatprep.subr.bf16.mxu0 0
    %1594 = vmatpush2.bf16.msra.mxu0 0
    %1595 = vmatprep.subr.bf16.mxu0 0
    %1596 = vmatpush2.bf16.msra.mxu0 0
    %1597 = vmatprep.subr.bf16.mxu0 0
    %1598 = vmatpush2.bf16.msra.mxu0 0
    %1599 = vmatprep.subr.bf16.mxu0 0
    %1600 = vmatpush2.bf16.msra.mxu0 0
    %1601 = vmatprep.subr.bf16.mxu0 0
    %1602 = vmatpush2.bf16.msra.mxu0 0
    %1603 = vmatprep.subr.bf16.mxu0 0
    %1604 = vmatpush2.bf16.msra.mxu0 0
    %1605 = vmatprep.mubr.bf16.mxu0 0
    %1606 = vmatmul.mubr.bf16.gmra.mxu0 %v1572
    %v1607 = vpop.f32.mrf.mxu0
    %v1608 = vadd.f32 %v524, %v1607
    %v1609 = vpop.f32.mrf.mxu0
    %v1610 = vpop.f32.mrf.mxu0
    %v1611 = vpop.f32.mrf.mxu0
    %1612 = vdwg.mxu0
    %s1613 = scalar_lea.vmem [#allocation12], 40
    %1614 = vst [vmem:[%s1613] sm:$0xff] %v1608
    %s1615 = sadd.s32 %s174, 6
    %s1616 = scalar_lea.vmem [#allocation3], 72
    %v1617 = vld [vmem:[%s1616] sm:$0xff]
    %v1618 = vld [vmem:[%s1616 + $0x8] sm:$0xf]
    %v1619 = vunpack.c.l.bf16 %v1617
    %v1620 = vunpack.c.h.bf16 %v1617
    %v1621 = vunpack.c.l.bf16 %v1618
    %1622 = vmatprep.subr.bf16.mxu0 %v283
    %1623 = vmatpush1.bf16.msra.mxu0 %v282
    %1624 = vmatprep.subr.bf16.mxu0 %v280
    %1625 = vmatpush1.bf16.msra.mxu0 %v279
    %1626 = vmatprep.subr.bf16.mxu0 %v277
    %1627 = vmatpush1.bf16.msra.mxu0 %v276
    %1628 = vmatprep.subr.bf16.mxu0 %v274
    %1629 = vmatpush1.bf16.msra.mxu0 %v273
    %1630 = vmatprep.subr.bf16.mxu0 %v271
    %1631 = vmatpush1.bf16.msra.mxu0 %v270
    %1632 = vmatprep.subr.bf16.mxu0 %v268
    %1633 = vmatpush1.bf16.msra.mxu0 %v267
    %1634 = vmatprep.subr.bf16.mxu0 %v265
    %1635 = vmatpush1.bf16.msra.mxu0 %v264
    %1636 = vmatprep.subr.bf16.mxu0 %v262
    %1637 = vmatpush1.bf16.msra.mxu0 %v261
    %1638 = vmatprep.subr.bf16.mxu0 0
    %1639 = vmatpush2.bf16.msra.mxu0 0
    %1640 = vmatprep.subr.bf16.mxu0 0
    %1641 = vmatpush2.bf16.msra.mxu0 0
    %1642 = vmatprep.subr.bf16.mxu0 0
    %1643 = vmatpush2.bf16.msra.mxu0 0
    %1644 = vmatprep.subr.bf16.mxu0 0
    %1645 = vmatpush2.bf16.msra.mxu0 0
    %1646 = vmatprep.subr.bf16.mxu0 0
    %1647 = vmatpush2.bf16.msra.mxu0 0
    %1648 = vmatprep.subr.bf16.mxu0 0
    %1649 = vmatpush2.bf16.msra.mxu0 0
    %1650 = vmatprep.subr.bf16.mxu0 0
    %1651 = vmatpush2.bf16.msra.mxu0 0
    %1652 = vmatprep.subr.bf16.mxu0 0
    %1653 = vmatpush2.bf16.msra.mxu0 0
    %1654 = vmatprep.mubr.bf16.mxu0 0
    %1655 = vmatmul.mubr.bf16.gmra.mxu0 %v1530
    %v1656 = vpop.f32.mrf.mxu0
    %v1657 = vadd.f32 0.0, %v1656
    %v1658 = vpop.f32.mrf.mxu0
    %v1659 = vadd.f32 0.0, %v1658
    %v1660 = vpop.f32.mrf.mxu0
    %v1661 = vpop.f32.mrf.mxu0
    %1662 = vdwg.mxu0
    %1663 = vmatprep.subr.bf16.mxu0 0
    %1664 = vmatpush1.bf16.msra.mxu0 %v284
    %1665 = vmatprep.subr.bf16.mxu0 0
    %1666 = vmatpush1.bf16.msra.mxu0 %v281
    %1667 = vmatprep.subr.bf16.mxu0 0
    %1668 = vmatpush1.bf16.msra.mxu0 %v278
    %1669 = vmatprep.subr.bf16.mxu0 0
    %1670 = vmatpush1.bf16.msra.mxu0 %v275
    %1671 = vmatprep.subr.bf16.mxu0 0
    %1672 = vmatpush1.bf16.msra.mxu0 %v272
    %1673 = vmatprep.subr.bf16.mxu0 0
    %1674 = vmatpush1.bf16.msra.mxu0 %v269
    %1675 = vmatprep.subr.bf16.mxu0 0
    %1676 = vmatpush1.bf16.msra.mxu0 %v266
    %1677 = vmatprep.subr.bf16.mxu0 0
    %1678 = vmatpush1.bf16.msra.mxu0 %v263
    %1679 = vmatprep.subr.bf16.mxu0 0
    %1680 = vmatpush2.bf16.msra.mxu0 0
    %1681 = vmatprep.subr.bf16.mxu0 0
    %1682 = vmatpush2.bf16.msra.mxu0 0
    %1683 = vmatprep.subr.bf16.mxu0 0
    %1684 = vmatpush2.bf16.msra.mxu0 0
    %1685 = vmatprep.subr.bf16.mxu0 0
    %1686 = vmatpush2.bf16.msra.mxu0 0
    %1687 = vmatprep.subr.bf16.mxu0 0
    %1688 = vmatpush2.bf16.msra.mxu0 0
    %1689 = vmatprep.subr.bf16.mxu0 0
    %1690 = vmatpush2.bf16.msra.mxu0 0
    %1691 = vmatprep.subr.bf16.mxu0 0
    %1692 = vmatpush2.bf16.msra.mxu0 0
    %1693 = vmatprep.subr.bf16.mxu0 0
    %1694 = vmatpush2.bf16.msra.mxu0 0
    %1695 = vmatprep.mubr.bf16.mxu0 0
    %1696 = vmatmul.mubr.bf16.gmra.mxu0 %v1530
    %v1697 = vpop.f32.mrf.mxu0
    %v1698 = vadd.f32 0.0, %v1697
    %v1699 = vpop.f32.mrf.mxu0
    %v1700 = vpop.f32.mrf.mxu0
    %v1701 = vpop.f32.mrf.mxu0
    %1702 = vdwg.mxu0
    %v1703 = vadd.f32 %v1619, %v1657
    %v1704 = vadd.f32 %v1620, %v1659
    %v1705 = vxor.u32 %v1703, 2147483648
    %v1706 = vxor.u32 %v1704, 2147483648
    %v1707 = vmul.f32 %v1705, 1.442695
    %v1708 = vpow.pop %v1707
    %v1709 = vmul.f32 %v1706, 1.442695
    %v1710 = vpow.pop %v1709
    %v1711 = vadd.f32 %v1708, 1.0
    %v1712 = vadd.f32 %v1710, 1.0
    %v1713 = vrcp.pop %v1711
    %v1714 = vmul.f32 1.0, %v1713
    %v1715 = vrcp.pop %v1712
    %v1716 = vmul.f32 1.0, %v1715
    %v1717 = vadd.f32 %v1698, %v408
    %v1718 = vmul.f32 %v1714, %v1717
    %v1719 = vadd.f32 %v1621, %v1718
    %v1720 = vtanh.pop %v1719
    %v1721 = vsub.f32 1.0, %v1716
    %v1722 = vmul.f32 %v1721, %v1720
    %v1723 = vmul.f32 %v1716, %v1529
    %v1724 = vadd.f32 %v1722, %v1723
    %p1725 = scmp.lt.s32.totalorder %s1615, 8
    %s1726 = scalar_select %p1725, 1, 0
    %v1727 = vstv %s1726
    %vm1728 = vcmp.eq.s32.totalorder %v1727, 1
    %v1729 = vsel %vm1728, %v1724, %v1529
    %v1730 = vpack.c.bf16 %v1729, %v1729
    %1731 = vmatprep.subr.bf16.mxu0 0
    %1732 = vmatpush1.bf16.msra.mxu0 %v469
    %1733 = vmatprep.subr.bf16.mxu0 0
    %1734 = vmatpush1.bf16.msra.mxu0 %v468
    %1735 = vmatprep.subr.bf16.mxu0 0
    %1736 = vmatpush1.bf16.msra.mxu0 %v467
    %1737 = vmatprep.subr.bf16.mxu0 0
    %1738 = vmatpush1.bf16.msra.mxu0 %v466
    %1739 = vmatprep.subr.bf16.mxu0 0
    %1740 = vmatpush1.bf16.msra.mxu0 %v465
    %1741 = vmatprep.subr.bf16.mxu0 0
    %1742 = vmatpush1.bf16.msra.mxu0 %v464
    %1743 = vmatprep.subr.bf16.mxu0 0
    %1744 = vmatpush1.bf16.msra.mxu0 %v463
    %1745 = vmatprep.subr.bf16.mxu0 0
    %1746 = vmatpush1.bf16.msra.mxu0 %v462
    %1747 = vmatprep.subr.bf16.mxu0 0
    %1748 = vmatpush2.bf16.msra.mxu0 0
    %1749 = vmatprep.subr.bf16.mxu0 0
    %1750 = vmatpush2.bf16.msra.mxu0 0
    %1751 = vmatprep.subr.bf16.mxu0 0
    %1752 = vmatpush2.bf16.msra.mxu0 0
    %1753 = vmatprep.subr.bf16.mxu0 0
    %1754 = vmatpush2.bf16.msra.mxu0 0
    %1755 = vmatprep.subr.bf16.mxu0 0
    %1756 = vmatpush2.bf16.msra.mxu0 0
    %1757 = vmatprep.subr.bf16.mxu0 0
    %1758 = vmatpush2.bf16.msra.mxu0 0
    %1759 = vmatprep.subr.bf16.mxu0 0
    %1760 = vmatpush2.bf16.msra.mxu0 0
    %1761 = vmatprep.subr.bf16.mxu0 0
    %1762 = vmatpush2.bf16.msra.mxu0 0
    %1763 = vmatprep.mubr.bf16.mxu0 0
    %1764 = vmatmul.mubr.bf16.gmra.mxu0 %v1730
    %v1765 = vpop.f32.mrf.mxu0
    %v1766 = vadd.f32 %v428, %v1765
    %v1767 = vpop.f32.mrf.mxu0
    %v1768 = vpop.f32.mrf.mxu0
    %v1769 = vpop.f32.mrf.mxu0
    %1770 = vdwg.mxu0
    %v1771 = vmax.f32 %v1766, 0.0
    %v1772 = vpack.c.bf16 %v1771, %v1771
    %1773 = vmatprep.subr.bf16.mxu0 0
    %1774 = vmatpush1.bf16.msra.mxu0 %v565
    %1775 = vmatprep.subr.bf16.mxu0 0
    %1776 = vmatpush1.bf16.msra.mxu0 %v564
    %1777 = vmatprep.subr.bf16.mxu0 0
    %1778 = vmatpush1.bf16.msra.mxu0 %v563
    %1779 = vmatprep.subr.bf16.mxu0 0
    %1780 = vmatpush1.bf16.msra.mxu0 %v562
    %1781 = vmatprep.subr.bf16.mxu0 0
    %1782 = vmatpush1.bf16.msra.mxu0 %v561
    %1783 = vmatprep.subr.bf16.mxu0 0
    %1784 = vmatpush1.bf16.msra.mxu0 %v560
    %1785 = vmatprep.subr.bf16.mxu0 0
    %1786 = vmatpush1.bf16.msra.mxu0 %v559
    %1787 = vmatprep.subr.bf16.mxu0 0
    %1788 = vmatpush1.bf16.msra.mxu0 %v558
    %1789 = vmatprep.subr.bf16.mxu0 0
    %1790 = vmatpush2.bf16.msra.mxu0 0
    %1791 = vmatprep.subr.bf16.mxu0 0
    %1792 = vmatpush2.bf16.msra.mxu0 0
    %1793 = vmatprep.subr.bf16.mxu0 0
    %1794 = vmatpush2.bf16.msra.mxu0 0
    %1795 = vmatprep.subr.bf16.mxu0 0
    %1796 = vmatpush2.bf16.msra.mxu0 0
    %1797 = vmatprep.subr.bf16.mxu0 0
    %1798 = vmatpush2.bf16.msra.mxu0 0
    %1799 = vmatprep.subr.bf16.mxu0 0
    %1800 = vmatpush2.bf16.msra.mxu0 0
    %1801 = vmatprep.subr.bf16.mxu0 0
    %1802 = vmatpush2.bf16.msra.mxu0 0
    %1803 = vmatprep.subr.bf16.mxu0 0
    %1804 = vmatpush2.bf16.msra.mxu0 0
    %1805 = vmatprep.mubr.bf16.mxu0 0
    %1806 = vmatmul.mubr.bf16.gmra.mxu0 %v1772
    %v1807 = vpop.f32.mrf.mxu0
    %v1808 = vadd.f32 %v524, %v1807
    %v1809 = vpop.f32.mrf.mxu0
    %v1810 = vpop.f32.mrf.mxu0
    %v1811 = vpop.f32.mrf.mxu0
    %1812 = vdwg.mxu0
    %s1813 = scalar_lea.vmem [#allocation12], 48
    %1814 = vst [vmem:[%s1813] sm:$0xff] %v1808
    %s1815 = sadd.s32 %s174, 7
    %s1816 = scalar_lea.vmem [#allocation3], 84
    %v1817 = vld [vmem:[%s1816] sm:$0xff]
    %v1818 = vld [vmem:[%s1816 + $0x8] sm:$0xf]
    %v1819 = vunpack.c.l.bf16 %v1817
    %v1820 = vunpack.c.h.bf16 %v1817
    %v1821 = vunpack.c.l.bf16 %v1818
    %1822 = vmatprep.subr.bf16.mxu0 %v283
    %1823 = vmatpush1.bf16.msra.mxu0 %v282
    %1824 = vmatprep.subr.bf16.mxu0 %v280
    %1825 = vmatpush1.bf16.msra.mxu0 %v279
    %1826 = vmatprep.subr.bf16.mxu0 %v277
    %1827 = vmatpush1.bf16.msra.mxu0 %v276
    %1828 = vmatprep.subr.bf16.mxu0 %v274
    %1829 = vmatpush1.bf16.msra.mxu0 %v273
    %1830 = vmatprep.subr.bf16.mxu0 %v271
    %1831 = vmatpush1.bf16.msra.mxu0 %v270
    %1832 = vmatprep.subr.bf16.mxu0 %v268
    %1833 = vmatpush1.bf16.msra.mxu0 %v267
    %1834 = vmatprep.subr.bf16.mxu0 %v265
    %1835 = vmatpush1.bf16.msra.mxu0 %v264
    %1836 = vmatprep.subr.bf16.mxu0 %v262
    %1837 = vmatpush1.bf16.msra.mxu0 %v261
    %1838 = vmatprep.subr.bf16.mxu0 0
    %1839 = vmatpush2.bf16.msra.mxu0 0
    %1840 = vmatprep.subr.bf16.mxu0 0
    %1841 = vmatpush2.bf16.msra.mxu0 0
    %1842 = vmatprep.subr.bf16.mxu0 0
    %1843 = vmatpush2.bf16.msra.mxu0 0
    %1844 = vmatprep.subr.bf16.mxu0 0
    %1845 = vmatpush2.bf16.msra.mxu0 0
    %1846 = vmatprep.subr.bf16.mxu0 0
    %1847 = vmatpush2.bf16.msra.mxu0 0
    %1848 = vmatprep.subr.bf16.mxu0 0
    %1849 = vmatpush2.bf16.msra.mxu0 0
    %1850 = vmatprep.subr.bf16.mxu0 0
    %1851 = vmatpush2.bf16.msra.mxu0 0
    %1852 = vmatprep.subr.bf16.mxu0 0
    %1853 = vmatpush2.bf16.msra.mxu0 0
    %1854 = vmatprep.mubr.bf16.mxu0 0
    %1855 = vmatmul.mubr.bf16.gmra.mxu0 %v1730
    %v1856 = vpop.f32.mrf.mxu0
    %v1857 = vadd.f32 0.0, %v1856
    %v1858 = vpop.f32.mrf.mxu0
    %v1859 = vadd.f32 0.0, %v1858
    %v1860 = vpop.f32.mrf.mxu0
    %v1861 = vpop.f32.mrf.mxu0
    %1862 = vdwg.mxu0
    %1863 = vmatprep.subr.bf16.mxu0 0
    %1864 = vmatpush1.bf16.msra.mxu0 %v284
    %1865 = vmatprep.subr.bf16.mxu0 0
    %1866 = vmatpush1.bf16.msra.mxu0 %v281
    %1867 = vmatprep.subr.bf16.mxu0 0
    %1868 = vmatpush1.bf16.msra.mxu0 %v278
    %1869 = vmatprep.subr.bf16.mxu0 0
    %1870 = vmatpush1.bf16.msra.mxu0 %v275
    %1871 = vmatprep.subr.bf16.mxu0 0
    %1872 = vmatpush1.bf16.msra.mxu0 %v272
    %1873 = vmatprep.subr.bf16.mxu0 0
    %1874 = vmatpush1.bf16.msra.mxu0 %v269
    %1875 = vmatprep.subr.bf16.mxu0 0
    %1876 = vmatpush1.bf16.msra.mxu0 %v266
    %1877 = vmatprep.subr.bf16.mxu0 0
    %1878 = vmatpush1.bf16.msra.mxu0 %v263
    %1879 = vmatprep.subr.bf16.mxu0 0
    %1880 = vmatpush2.bf16.msra.mxu0 0
    %1881 = vmatprep.subr.bf16.mxu0 0
    %1882 = vmatpush2.bf16.msra.mxu0 0
    %1883 = vmatprep.subr.bf16.mxu0 0
    %1884 = vmatpush2.bf16.msra.mxu0 0
    %1885 = vmatprep.subr.bf16.mxu0 0
    %1886 = vmatpush2.bf16.msra.mxu0 0
    %1887 = vmatprep.subr.bf16.mxu0 0
    %1888 = vmatpush2.bf16.msra.mxu0 0
    %1889 = vmatprep.subr.bf16.mxu0 0
    %1890 = vmatpush2.bf16.msra.mxu0 0
    %1891 = vmatprep.subr.bf16.mxu0 0
    %1892 = vmatpush2.bf16.msra.mxu0 0
    %1893 = vmatprep.subr.bf16.mxu0 0
    %1894 = vmatpush2.bf16.msra.mxu0 0
    %1895 = vmatprep.mubr.bf16.mxu0 0
    %1896 = vmatmul.mubr.bf16.gmra.mxu0 %v1730
    %v1897 = vpop.f32.mrf.mxu0
    %v1898 = vadd.f32 0.0, %v1897
    %v1899 = vpop.f32.mrf.mxu0
    %v1900 = vpop.f32.mrf.mxu0
    %v1901 = vpop.f32.mrf.mxu0
    %1902 = vdwg.mxu0
    %v1903 = vadd.f32 %v1819, %v1857
    %v1904 = vadd.f32 %v1820, %v1859
    %v1905 = vxor.u32 %v1903, 2147483648
    %v1906 = vxor.u32 %v1904, 2147483648
    %v1907 = vmul.f32 %v1905, 1.442695
    %v1908 = vpow.pop %v1907
    %v1909 = vmul.f32 %v1906, 1.442695
    %v1910 = vpow.pop %v1909
    %v1911 = vadd.f32 %v1908, 1.0
    %v1912 = vadd.f32 %v1910, 1.0
    %v1913 = vrcp.pop %v1911
    %v1914 = vmul.f32 1.0, %v1913
    %v1915 = vrcp.pop %v1912
    %v1916 = vmul.f32 1.0, %v1915
    %v1917 = vadd.f32 %v1898, %v408
    %v1918 = vmul.f32 %v1914, %v1917
    %v1919 = vadd.f32 %v1821, %v1918
    %v1920 = vtanh.pop %v1919
    %v1921 = vsub.f32 1.0, %v1916
    %v1922 = vmul.f32 %v1921, %v1920
    %v1923 = vmul.f32 %v1916, %v1729
    %v1924 = vadd.f32 %v1922, %v1923
    %p1925 = scmp.lt.s32.totalorder %s1815, 8
    %s1926 = scalar_select %p1925, 1, 0
    %v1927 = vstv %s1926
    %vm1928 = vcmp.eq.s32.totalorder %v1927, 1
    %v1929 = vsel %vm1928, %v1924, %v1729
    %v1930 = vpack.c.bf16 %v1929, %v1929
    %1931 = vmatprep.subr.bf16.mxu0 0
    %1932 = vmatpush1.bf16.msra.mxu0 %v469
    %1933 = vmatprep.subr.bf16.mxu0 0
    %1934 = vmatpush1.bf16.msra.mxu0 %v468
    %1935 = vmatprep.subr.bf16.mxu0 0
    %1936 = vmatpush1.bf16.msra.mxu0 %v467
    %1937 = vmatprep.subr.bf16.mxu0 0
    %1938 = vmatpush1.bf16.msra.mxu0 %v466
    %1939 = vmatprep.subr.bf16.mxu0 0
    %1940 = vmatpush1.bf16.msra.mxu0 %v465
    %1941 = vmatprep.subr.bf16.mxu0 0
    %1942 = vmatpush1.bf16.msra.mxu0 %v464
    %1943 = vmatprep.subr.bf16.mxu0 0
    %1944 = vmatpush1.bf16.msra.mxu0 %v463
    %1945 = vmatprep.subr.bf16.mxu0 0
    %1946 = vmatpush1.bf16.msra.mxu0 %v462
    %1947 = vmatprep.subr.bf16.mxu0 0
    %1948 = vmatpush2.bf16.msra.mxu0 0
    %1949 = vmatprep.subr.bf16.mxu0 0
    %1950 = vmatpush2.bf16.msra.mxu0 0
    %1951 = vmatprep.subr.bf16.mxu0 0
    %1952 = vmatpush2.bf16.msra.mxu0 0
    %1953 = vmatprep.subr.bf16.mxu0 0
    %1954 = vmatpush2.bf16.msra.mxu0 0
    %1955 = vmatprep.subr.bf16.mxu0 0
    %1956 = vmatpush2.bf16.msra.mxu0 0
    %1957 = vmatprep.subr.bf16.mxu0 0
    %1958 = vmatpush2.bf16.msra.mxu0 0
    %1959 = vmatprep.subr.bf16.mxu0 0
    %1960 = vmatpush2.bf16.msra.mxu0 0
    %1961 = vmatprep.subr.bf16.mxu0 0
    %1962 = vmatpush2.bf16.msra.mxu0 0
    %1963 = vmatprep.mubr.bf16.mxu0 0
    %1964 = vmatmul.mubr.bf16.gmra.mxu0 %v1930
    %v1965 = vpop.f32.mrf.mxu0
    %v1966 = vadd.f32 %v428, %v1965
    %v1967 = vpop.f32.mrf.mxu0
    %v1968 = vpop.f32.mrf.mxu0
    %v1969 = vpop.f32.mrf.mxu0
    %1970 = vdwg.mxu0
    %v1971 = vmax.f32 %v1966, 0.0
    %v1972 = vpack.c.bf16 %v1971, %v1971
    %1973 = vmatprep.subr.bf16.mxu0 0
    %1974 = vmatpush1.bf16.msra.mxu0 %v565
    %1975 = vmatprep.subr.bf16.mxu0 0
    %1976 = vmatpush1.bf16.msra.mxu0 %v564
    %1977 = vmatprep.subr.bf16.mxu0 0
    %1978 = vmatpush1.bf16.msra.mxu0 %v563
    %1979 = vmatprep.subr.bf16.mxu0 0
    %1980 = vmatpush1.bf16.msra.mxu0 %v562
    %1981 = vmatprep.subr.bf16.mxu0 0
    %1982 = vmatpush1.bf16.msra.mxu0 %v561
    %1983 = vmatprep.subr.bf16.mxu0 0
    %1984 = vmatpush1.bf16.msra.mxu0 %v560
    %1985 = vmatprep.subr.bf16.mxu0 0
    %1986 = vmatpush1.bf16.msra.mxu0 %v559
    %1987 = vmatprep.subr.bf16.mxu0 0
    %1988 = vmatpush1.bf16.msra.mxu0 %v558
    %1989 = vmatprep.subr.bf16.mxu0 0
    %1990 = vmatpush2.bf16.msra.mxu0 0
    %1991 = vmatprep.subr.bf16.mxu0 0
    %1992 = vmatpush2.bf16.msra.mxu0 0
    %1993 = vmatprep.subr.bf16.mxu0 0
    %1994 = vmatpush2.bf16.msra.mxu0 0
    %1995 = vmatprep.subr.bf16.mxu0 0
    %1996 = vmatpush2.bf16.msra.mxu0 0
    %1997 = vmatprep.subr.bf16.mxu0 0
    %1998 = vmatpush2.bf16.msra.mxu0 0
    %1999 = vmatprep.subr.bf16.mxu0 0
    %2000 = vmatpush2.bf16.msra.mxu0 0
    %2001 = vmatprep.subr.bf16.mxu0 0
    %2002 = vmatpush2.bf16.msra.mxu0 0
    %2003 = vmatprep.subr.bf16.mxu0 0
    %2004 = vmatpush2.bf16.msra.mxu0 0
    %2005 = vmatprep.mubr.bf16.mxu0 0
    %2006 = vmatmul.mubr.bf16.gmra.mxu0 %v1972
    %v2007 = vpop.f32.mrf.mxu0
    %v2008 = vadd.f32 %v524, %v2007
    %v2009 = vpop.f32.mrf.mxu0
    %v2010 = vpop.f32.mrf.mxu0
    %v2011 = vpop.f32.mrf.mxu0
    %2012 = vdwg.mxu0
    %s2013 = scalar_lea.vmem [#allocation12], 56
    %2014 = vst [vmem:[%s2013] sm:$0xff] %v2008
    %2015 = vst [vmem:[#allocation2] sm:$0xff] %v1929
    %2016 = vst [vmem:[#allocation13] sm:$0xff] %v1929
    // Predicated region
    $region58: #{tpu_custom_call.1} parent=1 // pred_check
      _
    $region59: #{tpu_custom_call.1} parent=1 // pred_check_branch
      %2018 = sbr.rel (0) target = $region61
    $region60: #{tpu_custom_call.1} parent=1 // pred_region
      %s2020 = ssub.s32 1024, 1024
      %2021 = vsyncadd [#allocation5], %s2020
      %s2022 = sshll.u32 [#allocation12], 4
      %s2023 = int_to_ptr.vmem [resolvable:$true] %s2022
      %2028 = dma.vmem_to_hbm [thread:$0]  %s2023, 1024, %s8, [#allocation5], 128, 128, 8
    $region61: #{tpu_custom_call.1} parent=1 // pred_fallthru
      _
    // Predicated region
    $region62: #{tpu_custom_call.1} parent=1 // pred_check
      _
    $region63: #{tpu_custom_call.1} parent=1 // pred_check_branch
      %2030 = sbr.rel (0) target = $region65
    $region64: #{tpu_custom_call.1} parent=1 // pred_region
      %s2032 = ssub.s32 128, 128
      %2033 = vsyncadd [#allocation14], %s2032
      %s2035 = sshll.u32 [#allocation13], 4
      %s2036 = int_to_ptr.vmem [resolvable:$true] %s2035
      %2038 = dma.vmem_to_hbm [thread:$0]  %s2036, 128, %s9, [#allocation14]
    $region65: #{tpu_custom_call.1} parent=1 // pred_fallthru
      _
    // Predicated region
    $region66: #{tpu_custom_call.1} parent=1 // pred_check
      _
    $region67: #{tpu_custom_call.1} parent=1 // pred_check_branch
      %2040 = sbr.rel (0) target = $region69
    $region68: #{tpu_custom_call.1} parent=1 // pred_region
      %2041 = dma.done [#allocation5], 1024
    $region69: #{tpu_custom_call.1} parent=1 // pred_fallthru
      _
    // Predicated region
    $region70: #{tpu_custom_call.1} parent=1 // pred_check
      _
    $region71: #{tpu_custom_call.1} parent=1 // pred_check_branch
      %2043 = sbr.rel (0) target = $region73
    $region72: #{tpu_custom_call.1} parent=1 // pred_region
      %2044 = dma.done [#allocation14], 128
    $region73: #{tpu_custom_call.1} parent=1 // pred_fallthru
      _
    %2045 = vsyncpa [#allocation4], 1
    %2046 = vsyncpa [#allocation7], 1
    %2047 = vsyncpa [#allocation10], 1
    %2048 = vsyncpa [#allocation5], 1
    %2049 = vsyncpa [#allocation14], 1

</llo_original>
